<compile_context>
chip_gen: v5e
topology: v5e:2x2
jax: 0.10.0
libtpu: 0.0.40
codegen_flags: <defaults>
</compile_context>

<pallas_src>
import functools

import jax
import jax.numpy as jnp
from jax.experimental import pallas as pl
from jax.experimental.pallas import tpu as pltpu

EPS = 1e-5


# ----------------------------------------------------------------------------
# Generation-aware defaults
# ----------------------------------------------------------------------------
def _tpu_kind():
    try:
        return jax.devices()[0].device_kind.lower()
    except Exception:
        return None


def _default_matmul_dtype(kind):
    # bf16 patches/weights on v6e/v7x (2x MXU rate on the 256-wide arrays,
    # half the patch-store traffic); keep f32 on v2-v5 (v5e VPU/EUP lack bf16).
    if kind is None:
        return jnp.float32
    if ("v6" in kind) or ("v7" in kind) or ("7x" in kind):
        return jnp.bfloat16
    return jnp.float32


def _default_vmem_limit(kind):
    if kind is not None and (("v7" in kind) or ("7x" in kind)):
        return 32 * 1024 * 1024          # v7x: 64 MiB physical VMEM
    return 64 * 1024 * 1024              # v5e/v6e: 128 MiB physical


def _default_tap_groups(kind):
    # v5e has a single vector-store slot: split the im2col into 3 groups of 3
    # taps so rolls/selects/stores of group g+1 overlap the MXU matmul of
    # group g.  On v6e/v7x one K=9*Cp matmul per conv is preferred.
    if kind is not None and any(g in kind for g in ("v2", "v3", "v4", "v5")):
        return 3
    return 1


# ----------------------------------------------------------------------------
# Kernel
# ----------------------------------------------------------------------------
def _resblock_kernel(masks_ref, x_ref, w1_ref, w2_ref, out_ref, p_ref, *,
                     H, W, C, Cp, tap_groups):
    """One batch block (bb images) per grid step.

    masks_ref: (8, HW)      f32 0/1 border masks for the 8 non-center taps
    x_ref    : (bb, C, HW)  f32 input images (channels unpadded)
    w1/w2    : (Cp, 9*Cp)   im2col conv weights, column index = tap*Cp + cin
    out_ref  : (bb, C, HW)  f32 output
    p_ref    : (9*Cp, HW)   VMEM scratch: im2col patch matrix (matmul dtype)
    """
    HW = H * W
    bb = x_ref.shape[0]
    inv_hw = 1.0 / HW

    # Tap order t = (dh+1)*3 + (dw+1); the center tap needs no roll/mask.
    taps = []
    mrow = 0
    for dh in (-1, 0, 1):
        for dw in (-1, 0, 1):
            if dh == 0 and dw == 0:
                taps.append((0, None))
            else:
                taps.append((dh * W + dw, mrow))
                mrow += 1

    tpg = 9 // tap_groups

    def conv3x3(inp, w_ref):
        # im2col: each tap is a cyclic lane roll (XLU slot) of the whole image
        # times a precomputed 0/1 border mask; patches are stored at Cp-aligned
        # sublane offsets (full unmasked tiles).  Each tap group is contracted
        # with its weight slice on the MXU (f32 accumulation) so patch building
        # of the next group overlaps the current matmul.
        acc = None
        for g in range(tap_groups):
            for t in range(g * tpg, (g + 1) * tpg):
                d, row = taps[t]
                shifted = pltpu.roll(inp, shift=(-d) % HW, axis=1) if d else inp
                if row is not None:
                    shifted = shifted * masks_ref[row:row + 1, :]
                p_ref[t * Cp:(t + 1) * Cp, :] = shifted.astype(p_ref.dtype)
            lo, hi = g * tpg * Cp, (g + 1) * tpg * Cp
            part = jnp.dot(w_ref[:, lo:hi], p_ref[lo:hi, :],
                           preferred_element_type=jnp.float32)
            acc = part if acc is None else acc + part
        return acc                                           # (Cp, HW) f32

    def instance_norm(y):
        # Two-pass form (mean, then centered variance): numerically robust and
        # the same op count since (y - mean) is needed for the output anyway.
        m = jnp.sum(y, axis=1, keepdims=True) * inv_hw
        d = y - m
        var = jnp.sum(d * d, axis=1, keepdims=True) * inv_hw
        return d * jax.lax.rsqrt(var + EPS)

    # Channel pad rows (only when C is not a multiple of the sublane tile):
    # hoisted zeros, a single concat per image, so every p_ref store stays a
    # full aligned tile and the zero-padded weight rows/cols see exact zeros.
    zrows = jnp.zeros((Cp - C, HW), jnp.float32) if Cp != C else None

    def one_image(b, carry):
        x = x_ref[b]                                         # (C, HW) f32
        xp = x if zrows is None else jnp.concatenate([x, zrows], axis=0)
        # Conv2dBlock #1: conv3x3 -> IN -> ReLU (bias exactly cancelled by IN).
        y1 = jnp.maximum(instance_norm(conv3x3(xp, w1_ref)), 0.0)
        # Conv2dBlock #2: conv3x3 -> IN (activation='none').
        y2 = instance_norm(conv3x3(y1, w2_ref))
        if Cp != C:
            y2 = y2[:C, :]
        # Residual add re-reads the VMEM block instead of keeping x live across
        # both convs (frees vregs for patch/IN temporaries at realistic sizes).
        out_ref[b] = y2 + x_ref[b]
        return carry

    if bb == 1:
        one_image(0, None)
    else:
        jax.lax.fori_loop(0, bb, one_image, None, unroll=True)


# ----------------------------------------------------------------------------
# Wrapper
# ----------------------------------------------------------------------------
def _pick_batch_block(N, C, Cp, HW, mm_itemsize, vmem_limit):
    """Largest divisor of N (<= 8) whose working set fits the VMEM budget."""
    budget = int(0.6 * vmem_limit)
    fixed = 9 * Cp * HW * mm_itemsize                  # p_ref scratch
    fixed += 2 * 2 * Cp * 9 * Cp * mm_itemsize         # 2 weights (worst-case 2 bufs)
    fixed += 2 * 8 * HW * 4                            # border masks
    per_img = 2 * 2 * C * HW * 4                       # in + out blocks, 2 bufs, f32
    for bb in range(min(N, 8), 0, -1):
        if N % bb == 0 and fixed + bb * per_img <= budget:
            return bb
    return 1


def resblock_pallas(x_nchw, w1, w2, *, matmul_dtype=None, tap_groups=None,
                    batch_block=None):
    """Fused ResBlock forward.

    x_nchw : (N, C, H, W) float32
    w1, w2 : (9, C, C) tap-major conv weights [dh*3+dw, cin, cout]
    Conv biases are intentionally not accepted: they are mathematically
    redundant before affine-free InstanceNorm.
    """
    N, C, H, W = x_nchw.shape
    HW = H * W

    kind = _tpu_kind()
    if matmul_dtype is None:
        matmul_dtype = _default_matmul_dtype(kind)     # bf16 on v6e/v7x, f32 on v5e
    if tap_groups is None:
        tap_groups = _default_tap_groups(kind)         # 3 on v5e, 1 on v6e/v7x
    assert 9 % tap_groups == 0
    vmem_limit = _default_vmem_limit(kind)
    mm_itemsize = jnp.dtype(matmul_dtype).itemsize

    # Pad channels to the sublane tile of the patch/matmul dtype (8 rows for
    # f32, 16 for bf16) so every p_ref store is a full unmasked tile.  The pad
    # lives only inside the kernel: x and out stay unpadded in HBM.
    sub = 16 if mm_itemsize == 2 else 8
    Cp = ((C + sub - 1) // sub) * sub

    # Free reshape (contiguous): NCHW -> (N, C, HW).  NOTE: if H*W is not a
    # multiple of 128 the kernel stays correct but stores become lane-masked.
    x = x_nchw.reshape(N, C, HW).astype(jnp.float32)

    def prep_w(w):
        # (9, C, C)[tap, cin, cout] -> (Cp, 9*Cp), column index = tap*Cp + cin.
        w = w.astype(jnp.float32)
        if Cp != C:
            w = jnp.pad(w, ((0, 0), (0, Cp - C), (0, Cp - C)))
        return jnp.transpose(w, (2, 0, 1)).reshape(Cp, 9 * Cp).astype(matmul_dtype)

    w1c, w2c = prep_w(w1), prep_w(w2)

    # Precomputed 0/1 border masks for the 8 non-center taps: hoisted out of
    # the kernel (no per-step iota/div/mod/compare chains on the VPU) and kept
    # resident via a constant index_map.
    lin = jnp.arange(HW, dtype=jnp.int32)
    hh, ww = lin // W, lin % W
    rows = []
    for dh in (-1, 0, 1):
        for dw in (-1, 0, 1):
            if dh == 0 and dw == 0:
                continue
            m = jnp.ones((HW,), jnp.bool_)
            if dh < 0:
                m = m & (hh >= -dh)
            if dh > 0:
                m = m & (hh < H - dh)
            if dw < 0:
                m = m & (ww >= -dw)
            if dw > 0:
                m = m & (ww < W - dw)
            rows.append(m)
    masks = jnp.stack(rows, axis=0).astype(jnp.float32)       # (8, HW)

    # Batch blocking: amortize the ~0.35us per-grid-step overhead by running
    # several images per step, as long as the working set fits the budget.
    if batch_block is None:
        batch_block = _pick_batch_block(N, C, Cp, HW, mm_itemsize, vmem_limit)
    bb = batch_block
    assert N % bb == 0

    # Weights use a constant index_map (resident across steps).  When they are
    # large (big C), single-buffer them so the second copy's VMEM goes to
    # activations instead (matters on v7x's 64 MiB VMEM).
    def make_w_spec():
        if Cp * 9 * Cp * mm_itemsize > (2 << 20):
            return pl.BlockSpec((Cp, 9 * Cp), lambda n: (0, 0),
                                pipeline_mode=pl.Buffered(1))
        return pl.BlockSpec((Cp, 9 * Cp), lambda n: (0, 0))

    kernel = functools.partial(_resblock_kernel, H=H, W=W, C=C, Cp=Cp,
                               tap_groups=tap_groups)

    out = pl.pallas_call(
        kernel,
        out_shape=jax.ShapeDtypeStruct((N, C, HW), jnp.float32),
        grid_spec=pltpu.PrefetchScalarGridSpec(
            num_scalar_prefetch=0,
            grid=(N // bb,),
            in_specs=[
                pl.BlockSpec((8, HW), lambda n: (0, 0)),         # border masks
                pl.BlockSpec((bb, C, HW), lambda n: (n, 0, 0)),  # x
                make_w_spec(),                                   # w1
                make_w_spec(),                                   # w2
            ],
            out_specs=pl.BlockSpec((bb, C, HW), lambda n: (n, 0, 0)),
            scratch_shapes=[pltpu.VMEM((9 * Cp, HW), matmul_dtype)],
        ),
        compiler_params=pltpu.CompilerParams(
            dimension_semantics=("parallel",),                   # megacore-shardable
            vmem_limit_bytes=vmem_limit,
        ),
    )(masks, x, w1c, w2c)

    return out.reshape(N, C, H, W)


# ----------------------------------------------------------------------------
# Pure-JAX reference (mirrors the PyTorch module, biases included)
# ----------------------------------------------------------------------------
def resblock_reference(x_nchw, w1, b1, w2, b2):
    N, C, H, W = x_nchw.shape
    x = jnp.transpose(x_nchw, (0, 2, 3, 1)).astype(jnp.float32)

    def conv(x, w, b):
        w_hwio = w.reshape(3, 3, C, C)
        y = jax.lax.conv_general_dilated(
            x, w_hwio, window_strides=(1, 1), padding='SAME',
            dimension_numbers=('NHWC', 'HWIO', 'NHWC'))
        return y + b.reshape(1, 1, 1, C)

    def inorm(y):
        m = y.mean(axis=(1, 2), keepdims=True)
        v = ((y - m) ** 2).mean(axis=(1, 2), keepdims=True)
        return (y - m) * jax.lax.rsqrt(v + EPS)

    y = jnp.maximum(inorm(conv(x, w1, b1)), 0.0)
    y = inorm(conv(y, w2, b2))
    out = y + x
    return jnp.transpose(out, (0, 3, 1, 2))


if __name__ == "__main__":
    # dim=4, batch=2, spatial=16x16
    N, C, H, W = 2, 4, 16, 16

    key = jax.random.PRNGKey(0)
    kx, kw1, kb1, kw2, kb2 = jax.random.split(key, 5)
    x = jax.random.normal(kx, (N, C, H, W), jnp.float32)
    # conv weights stored tap-major (dh*3+dw, cin, cout); deterministic init.
    w1 = jax.random.normal(kw1, (9, C, C), jnp.float32) * 0.1
    b1 = jax.random.normal(kb1, (C,), jnp.float32) * 0.1
    w2 = jax.random.normal(kw2, (9, C, C), jnp.float32) * 0.1
    b2 = jax.random.normal(kb2, (C,), jnp.float32) * 0.1

    # The kernel drops the biases (cancelled exactly by affine-free IN); the
    # reference keeps them to verify the equivalence.
    ref = resblock_reference(x, w1, b1, w2, b2)

    # 1) Exact f32 path — tight tolerance.
    out_f32 = jax.block_until_ready(
        resblock_pallas(x, w1, w2, matmul_dtype=jnp.float32))
    assert out_f32.shape == (N, C, H, W)
    err32 = float(jnp.max(jnp.abs(out_f32 - ref)))
    assert jnp.allclose(out_f32, ref, atol=1e-4, rtol=1e-4), \
        f"f32 max abs err {err32}"

    # 2) Generation-default path (bf16 patches/weights on v6e/v7x, f32 on v5e);
    #    tolerance is dtype-aware: bf16 rounding through two conv+IN stages
    #    bounds the error at a few 1e-2 on O(1) normalized values.
    auto_dtype = _default_matmul_dtype(_tpu_kind())
    out_auto = jax.block_until_ready(resblock_pallas(x, w1, w2))
    if auto_dtype == jnp.float32:
        atol = rtol = 1e-4
    else:
        atol = rtol = 7.5e-2
    err_auto = float(jnp.max(jnp.abs(out_auto - ref)))
    assert jnp.allclose(out_auto, ref, atol=atol, rtol=rtol), \
        f"{jnp.dtype(auto_dtype).name} max abs err {err_auto}"

    print("KERNEL_OK")
</pallas_src>

<mosaic_0001>
module attributes {stable_mosaic.version = 11 : i64} {
  func.func @_resblock_kernel(%arg0: i32, %arg1: memref<8x256xf32, #tpu.memory_space<vmem>>, %arg2: memref<2x4x256xf32, #tpu.memory_space<vmem>>, %arg3: memref<8x72xf32, #tpu.memory_space<vmem>>, %arg4: memref<8x72xf32, #tpu.memory_space<vmem>>, %arg5: memref<2x4x256xf32, #tpu.memory_space<vmem>>, %arg6: memref<72x256xf32, #tpu.memory_space<vmem>>) attributes {dimension_semantics = [#tpu.dimension_semantics<parallel>], iteration_bounds = array<i64: 1>, scalar_prefetch = 0 : i64, scratch_operands = 1 : i64, tpu.core_type = #tpu.core_type<tc>, window_params = [{pipeline_mode = #tpu.pipeline_mode<synchronous>, transform_indices = @transform_0, window_bounds = array<i64: 8, 256>}, {transform_indices = @transform_1, window_bounds = array<i64: 2, 4, 256>}, {pipeline_mode = #tpu.pipeline_mode<synchronous>, transform_indices = @transform_2, window_bounds = array<i64: 8, 72>}, {pipeline_mode = #tpu.pipeline_mode<synchronous>, transform_indices = @transform_3, window_bounds = array<i64: 8, 72>}, {transform_indices = @transform_4, window_bounds = array<i64: 2, 4, 256>}]} {
    %cst = arith.constant 0.000000e+00 : f32
    %0 = vector.broadcast %cst : f32 to vector<4x256xf32>
    %c0_i32 = arith.constant 0 : i32
    %1 = arith.index_cast %c0_i32 : i32 to index
    %c0 = arith.constant 0 : index
    %c0_0 = arith.constant 0 : index
    %2 = vector.load %arg2[%1, %c0, %c0_0] : memref<2x4x256xf32, #tpu.memory_space<vmem>>, vector<1x4x256xf32>
    %3 = vector.shape_cast %2 : vector<1x4x256xf32> to vector<4x256xf32>
    %4 = tpu.concatenate %3, %0 in 0 : vector<4x256xf32>, vector<4x256xf32> -> vector<8x256xf32>
    %c17_i32 = arith.constant 17 : i32
    %5 = tpu.dynamic_rotate %4 by %c17_i32 dim 1 : vector<8x256xf32>, i32 -> vector<8x256xf32>
    %c0_1 = arith.constant 0 : index
    %c0_2 = arith.constant 0 : index
    %6 = vector.load %arg1[%c0_1, %c0_2] : memref<8x256xf32, #tpu.memory_space<vmem>>, vector<1x256xf32>
    %7 = vector.broadcast %6 : vector<1x256xf32> to vector<8x256xf32>
    %8 = arith.mulf %5, %7 : vector<8x256xf32>
    %c0_3 = arith.constant 0 : index
    %c0_4 = arith.constant 0 : index
    %9 = vector.load %arg6[%c0_3, %c0_4] : memref<72x256xf32, #tpu.memory_space<vmem>>, vector<8x256xf32>
    tpu.vector_store %arg6[%c0_3, %c0_4], %8 {strides = array<i32>} : memref<72x256xf32, #tpu.memory_space<vmem>>, vector<8x256xf32>,
    %c16_i32 = arith.constant 16 : i32
    %10 = tpu.dynamic_rotate %4 by %c16_i32 dim 1 : vector<8x256xf32>, i32 -> vector<8x256xf32>
    %c1 = arith.constant 1 : index
    %c0_5 = arith.constant 0 : index
    %11 = vector.load %arg1[%c1, %c0_5] : memref<8x256xf32, #tpu.memory_space<vmem>>, vector<1x256xf32>
    %12 = vector.broadcast %11 : vector<1x256xf32> to vector<8x256xf32>
    %13 = arith.mulf %10, %12 : vector<8x256xf32>
    %c8 = arith.constant 8 : index
    %c0_6 = arith.constant 0 : index
    %14 = vector.load %arg6[%c8, %c0_6] : memref<72x256xf32, #tpu.memory_space<vmem>>, vector<8x256xf32>
    tpu.vector_store %arg6[%c8, %c0_6], %13 {strides = array<i32>} : memref<72x256xf32, #tpu.memory_space<vmem>>, vector<8x256xf32>,
    %c15_i32 = arith.constant 15 : i32
    %15 = tpu.dynamic_rotate %4 by %c15_i32 dim 1 : vector<8x256xf32>, i32 -> vector<8x256xf32>
    %c2 = arith.constant 2 : index
    %c0_7 = arith.constant 0 : index
    %16 = vector.load %arg1[%c2, %c0_7] : memref<8x256xf32, #tpu.memory_space<vmem>>, vector<1x256xf32>
    %17 = vector.broadcast %16 : vector<1x256xf32> to vector<8x256xf32>
    %18 = arith.mulf %15, %17 : vector<8x256xf32>
    %c16 = arith.constant 16 : index
    %c0_8 = arith.constant 0 : index
    %19 = vector.load %arg6[%c16, %c0_8] : memref<72x256xf32, #tpu.memory_space<vmem>>, vector<8x256xf32>
    tpu.vector_store %arg6[%c16, %c0_8], %18 {strides = array<i32>} : memref<72x256xf32, #tpu.memory_space<vmem>>, vector<8x256xf32>,
    %c1_i32 = arith.constant 1 : i32
    %20 = tpu.dynamic_rotate %4 by %c1_i32 dim 1 : vector<8x256xf32>, i32 -> vector<8x256xf32>
    %c3 = arith.constant 3 : index
    %c0_9 = arith.constant 0 : index
    %21 = vector.load %arg1[%c3, %c0_9] : memref<8x256xf32, #tpu.memory_space<vmem>>, vector<1x256xf32>
    %22 = vector.broadcast %21 : vector<1x256xf32> to vector<8x256xf32>
    %23 = arith.mulf %20, %22 : vector<8x256xf32>
    %c24 = arith.constant 24 : index
    %c0_10 = arith.constant 0 : index
    %24 = vector.load %arg6[%c24, %c0_10] : memref<72x256xf32, #tpu.memory_space<vmem>>, vector<8x256xf32>
    tpu.vector_store %arg6[%c24, %c0_10], %23 {strides = array<i32>} : memref<72x256xf32, #tpu.memory_space<vmem>>, vector<8x256xf32>,
    %c32 = arith.constant 32 : index
    %c0_11 = arith.constant 0 : index
    %25 = vector.load %arg6[%c32, %c0_11] : memref<72x256xf32, #tpu.memory_space<vmem>>, vector<8x256xf32>
    tpu.vector_store %arg6[%c32, %c0_11], %4 {strides = array<i32>} : memref<72x256xf32, #tpu.memory_space<vmem>>, vector<8x256xf32>,
    %c255_i32 = arith.constant 255 : i32
    %26 = tpu.dynamic_rotate %4 by %c255_i32 dim 1 : vector<8x256xf32>, i32 -> vector<8x256xf32>
    %c4 = arith.constant 4 : index
    %c0_12 = arith.constant 0 : index
    %27 = vector.load %arg1[%c4, %c0_12] : memref<8x256xf32, #tpu.memory_space<vmem>>, vector<1x256xf32>
    %28 = vector.broadcast %27 : vector<1x256xf32> to vector<8x256xf32>
    %29 = arith.mulf %26, %28 : vector<8x256xf32>
    %c40 = arith.constant 40 : index
    %c0_13 = arith.constant 0 : index
    %30 = vector.load %arg6[%c40, %c0_13] : memref<72x256xf32, #tpu.memory_space<vmem>>, vector<8x256xf32>
    tpu.vector_store %arg6[%c40, %c0_13], %29 {strides = array<i32>} : memref<72x256xf32, #tpu.memory_space<vmem>>, vector<8x256xf32>,
    %c241_i32 = arith.constant 241 : i32
    %31 = tpu.dynamic_rotate %4 by %c241_i32 dim 1 : vector<8x256xf32>, i32 -> vector<8x256xf32>
    %c5 = arith.constant 5 : index
    %c0_14 = arith.constant 0 : index
    %32 = vector.load %arg1[%c5, %c0_14] : memref<8x256xf32, #tpu.memory_space<vmem>>, vector<1x256xf32>
    %33 = vector.broadcast %32 : vector<1x256xf32> to vector<8x256xf32>
    %34 = arith.mulf %31, %33 : vector<8x256xf32>
    %c48 = arith.constant 48 : index
    %c0_15 = arith.constant 0 : index
    %35 = vector.load %arg6[%c48, %c0_15] : memref<72x256xf32, #tpu.memory_space<vmem>>, vector<8x256xf32>
    tpu.vector_store %arg6[%c48, %c0_15], %34 {strides = array<i32>} : memref<72x256xf32, #tpu.memory_space<vmem>>, vector<8x256xf32>,
    %c240_i32 = arith.constant 240 : i32
    %36 = tpu.dynamic_rotate %4 by %c240_i32 dim 1 : vector<8x256xf32>, i32 -> vector<8x256xf32>
    %c6 = arith.constant 6 : index
    %c0_16 = arith.constant 0 : index
    %37 = vector.load %arg1[%c6, %c0_16] : memref<8x256xf32, #tpu.memory_space<vmem>>, vector<1x256xf32>
    %38 = vector.broadcast %37 : vector<1x256xf32> to vector<8x256xf32>
    %39 = arith.mulf %36, %38 : vector<8x256xf32>
    %c56 = arith.constant 56 : index
    %c0_17 = arith.constant 0 : index
    %40 = vector.load %arg6[%c56, %c0_17] : memref<72x256xf32, #tpu.memory_space<vmem>>, vector<8x256xf32>
    tpu.vector_store %arg6[%c56, %c0_17], %39 {strides = array<i32>} : memref<72x256xf32, #tpu.memory_space<vmem>>, vector<8x256xf32>,
    %c239_i32 = arith.constant 239 : i32
    %41 = tpu.dynamic_rotate %4 by %c239_i32 dim 1 : vector<8x256xf32>, i32 -> vector<8x256xf32>
    %c7 = arith.constant 7 : index
    %c0_18 = arith.constant 0 : index
    %42 = vector.load %arg1[%c7, %c0_18] : memref<8x256xf32, #tpu.memory_space<vmem>>, vector<1x256xf32>
    %43 = vector.broadcast %42 : vector<1x256xf32> to vector<8x256xf32>
    %44 = arith.mulf %41, %43 : vector<8x256xf32>
    %c64 = arith.constant 64 : index
    %c0_19 = arith.constant 0 : index
    %45 = vector.load %arg6[%c64, %c0_19] : memref<72x256xf32, #tpu.memory_space<vmem>>, vector<8x256xf32>
    tpu.vector_store %arg6[%c64, %c0_19], %44 {strides = array<i32>} : memref<72x256xf32, #tpu.memory_space<vmem>>, vector<8x256xf32>,
    %c0_20 = arith.constant 0 : index
    %c0_21 = arith.constant 0 : index
    %46 = vector.load %arg3[%c0_20, %c0_21] : memref<8x72xf32, #tpu.memory_space<vmem>>, vector<8x72xf32>
    %c0_22 = arith.constant 0 : index
    %c0_23 = arith.constant 0 : index
    %47 = vector.load %arg6[%c0_22, %c0_23] : memref<72x256xf32, #tpu.memory_space<vmem>>, vector<72x256xf32>
    %cst_24 = arith.constant dense<0.000000e+00> : vector<8x256xf32>
    %48 = tpu.matmul %46, %47, %cst_24 {dimension_numbers = #tpu.dot_dimension_numbers<[1], [0], [0], [1], [0, 0, 1, 1], [], []>} : vector<8x72xf32>, vector<72x256xf32>, vector<8x256xf32> -> vector<8x256xf32>
    %cst_25 = arith.constant dense<0.000000e+00> : vector<8xf32>
    %49 = vector.multi_reduction <add>, %48, %cst_25 [1] : vector<8x256xf32> to vector<8xf32>
    %50 = vector.shape_cast %49 : vector<8xf32> to vector<8x1xf32>
    %cst_26 = arith.constant 3.906250e-03 : f32
    %51 = vector.broadcast %cst_26 : f32 to vector<8x1xf32>
    %52 = arith.mulf %50, %51 : vector<8x1xf32>
    %53 = vector.broadcast %52 : vector<8x1xf32> to vector<8x256xf32>
    %54 = arith.subf %48, %53 : vector<8x256xf32>
    %55 = arith.mulf %54, %54 : vector<8x256xf32>
    %cst_27 = arith.constant dense<0.000000e+00> : vector<8xf32>
    %56 = vector.multi_reduction <add>, %55, %cst_27 [1] : vector<8x256xf32> to vector<8xf32>
    %57 = vector.shape_cast %56 : vector<8xf32> to vector<8x1xf32>
    %cst_28 = arith.constant 3.906250e-03 : f32
    %58 = vector.broadcast %cst_28 : f32 to vector<8x1xf32>
    %59 = arith.mulf %57, %58 : vector<8x1xf32>
    %cst_29 = arith.constant 9.99999974E-6 : f32
    %60 = vector.broadcast %cst_29 : f32 to vector<8x1xf32>
    %61 = arith.addf %59, %60 : vector<8x1xf32>
    %62 = math.rsqrt %61 : vector<8x1xf32>
    %63 = vector.broadcast %62 : vector<8x1xf32> to vector<8x256xf32>
    %64 = arith.mulf %54, %63 : vector<8x256xf32>
    %cst_30 = arith.constant 0.000000e+00 : f32
    %65 = vector.broadcast %cst_30 : f32 to vector<8x256xf32>
    %66 = arith.maximumf %64, %65 : vector<8x256xf32>
    %c17_i32_31 = arith.constant 17 : i32
    %67 = tpu.dynamic_rotate %66 by %c17_i32_31 dim 1 : vector<8x256xf32>, i32 -> vector<8x256xf32>
    %c0_32 = arith.constant 0 : index
    %c0_33 = arith.constant 0 : index
    %68 = vector.load %arg1[%c0_32, %c0_33] : memref<8x256xf32, #tpu.memory_space<vmem>>, vector<1x256xf32>
    %69 = vector.broadcast %68 : vector<1x256xf32> to vector<8x256xf32>
    %70 = arith.mulf %67, %69 : vector<8x256xf32>
    %c0_34 = arith.constant 0 : index
    %c0_35 = arith.constant 0 : index
    %71 = vector.load %arg6[%c0_34, %c0_35] : memref<72x256xf32, #tpu.memory_space<vmem>>, vector<8x256xf32>
    tpu.vector_store %arg6[%c0_34, %c0_35], %70 {strides = array<i32>} : memref<72x256xf32, #tpu.memory_space<vmem>>, vector<8x256xf32>,
    %c16_i32_36 = arith.constant 16 : i32
    %72 = tpu.dynamic_rotate %66 by %c16_i32_36 dim 1 : vector<8x256xf32>, i32 -> vector<8x256xf32>
    %c1_37 = arith.constant 1 : index
    %c0_38 = arith.constant 0 : index
    %73 = vector.load %arg1[%c1_37, %c0_38] : memref<8x256xf32, #tpu.memory_space<vmem>>, vector<1x256xf32>
    %74 = vector.broadcast %73 : vector<1x256xf32> to vector<8x256xf32>
    %75 = arith.mulf %72, %74 : vector<8x256xf32>
    %c8_39 = arith.constant 8 : index
    %c0_40 = arith.constant 0 : index
    %76 = vector.load %arg6[%c8_39, %c0_40] : memref<72x256xf32, #tpu.memory_space<vmem>>, vector<8x256xf32>
    tpu.vector_store %arg6[%c8_39, %c0_40], %75 {strides = array<i32>} : memref<72x256xf32, #tpu.memory_space<vmem>>, vector<8x256xf32>,
    %c15_i32_41 = arith.constant 15 : i32
    %77 = tpu.dynamic_rotate %66 by %c15_i32_41 dim 1 : vector<8x256xf32>, i32 -> vector<8x256xf32>
    %c2_42 = arith.constant 2 : index
    %c0_43 = arith.constant 0 : index
    %78 = vector.load %arg1[%c2_42, %c0_43] : memref<8x256xf32, #tpu.memory_space<vmem>>, vector<1x256xf32>
    %79 = vector.broadcast %78 : vector<1x256xf32> to vector<8x256xf32>
    %80 = arith.mulf %77, %79 : vector<8x256xf32>
    %c16_44 = arith.constant 16 : index
    %c0_45 = arith.constant 0 : index
    %81 = vector.load %arg6[%c16_44, %c0_45] : memref<72x256xf32, #tpu.memory_space<vmem>>, vector<8x256xf32>
    tpu.vector_store %arg6[%c16_44, %c0_45], %80 {strides = array<i32>} : memref<72x256xf32, #tpu.memory_space<vmem>>, vector<8x256xf32>,
    %c1_i32_46 = arith.constant 1 : i32
    %82 = tpu.dynamic_rotate %66 by %c1_i32_46 dim 1 : vector<8x256xf32>, i32 -> vector<8x256xf32>
    %c3_47 = arith.constant 3 : index
    %c0_48 = arith.constant 0 : index
    %83 = vector.load %arg1[%c3_47, %c0_48] : memref<8x256xf32, #tpu.memory_space<vmem>>, vector<1x256xf32>
    %84 = vector.broadcast %83 : vector<1x256xf32> to vector<8x256xf32>
    %85 = arith.mulf %82, %84 : vector<8x256xf32>
    %c24_49 = arith.constant 24 : index
    %c0_50 = arith.constant 0 : index
    %86 = vector.load %arg6[%c24_49, %c0_50] : memref<72x256xf32, #tpu.memory_space<vmem>>, vector<8x256xf32>
    tpu.vector_store %arg6[%c24_49, %c0_50], %85 {strides = array<i32>} : memref<72x256xf32, #tpu.memory_space<vmem>>, vector<8x256xf32>,
    %c32_51 = arith.constant 32 : index
    %c0_52 = arith.constant 0 : index
    %87 = vector.load %arg6[%c32_51, %c0_52] : memref<72x256xf32, #tpu.memory_space<vmem>>, vector<8x256xf32>
    tpu.vector_store %arg6[%c32_51, %c0_52], %66 {strides = array<i32>} : memref<72x256xf32, #tpu.memory_space<vmem>>, vector<8x256xf32>,
    %c255_i32_53 = arith.constant 255 : i32
    %88 = tpu.dynamic_rotate %66 by %c255_i32_53 dim 1 : vector<8x256xf32>, i32 -> vector<8x256xf32>
    %c4_54 = arith.constant 4 : index
    %c0_55 = arith.constant 0 : index
    %89 = vector.load %arg1[%c4_54, %c0_55] : memref<8x256xf32, #tpu.memory_space<vmem>>, vector<1x256xf32>
    %90 = vector.broadcast %89 : vector<1x256xf32> to vector<8x256xf32>
    %91 = arith.mulf %88, %90 : vector<8x256xf32>
    %c40_56 = arith.constant 40 : index
    %c0_57 = arith.constant 0 : index
    %92 = vector.load %arg6[%c40_56, %c0_57] : memref<72x256xf32, #tpu.memory_space<vmem>>, vector<8x256xf32>
    tpu.vector_store %arg6[%c40_56, %c0_57], %91 {strides = array<i32>} : memref<72x256xf32, #tpu.memory_space<vmem>>, vector<8x256xf32>,
    %c241_i32_58 = arith.constant 241 : i32
    %93 = tpu.dynamic_rotate %66 by %c241_i32_58 dim 1 : vector<8x256xf32>, i32 -> vector<8x256xf32>
    %c5_59 = arith.constant 5 : index
    %c0_60 = arith.constant 0 : index
    %94 = vector.load %arg1[%c5_59, %c0_60] : memref<8x256xf32, #tpu.memory_space<vmem>>, vector<1x256xf32>
    %95 = vector.broadcast %94 : vector<1x256xf32> to vector<8x256xf32>
    %96 = arith.mulf %93, %95 : vector<8x256xf32>
    %c48_61 = arith.constant 48 : index
    %c0_62 = arith.constant 0 : index
    %97 = vector.load %arg6[%c48_61, %c0_62] : memref<72x256xf32, #tpu.memory_space<vmem>>, vector<8x256xf32>
    tpu.vector_store %arg6[%c48_61, %c0_62], %96 {strides = array<i32>} : memref<72x256xf32, #tpu.memory_space<vmem>>, vector<8x256xf32>,
    %c240_i32_63 = arith.constant 240 : i32
    %98 = tpu.dynamic_rotate %66 by %c240_i32_63 dim 1 : vector<8x256xf32>, i32 -> vector<8x256xf32>
    %c6_64 = arith.constant 6 : index
    %c0_65 = arith.constant 0 : index
    %99 = vector.load %arg1[%c6_64, %c0_65] : memref<8x256xf32, #tpu.memory_space<vmem>>, vector<1x256xf32>
    %100 = vector.broadcast %99 : vector<1x256xf32> to vector<8x256xf32>
    %101 = arith.mulf %98, %100 : vector<8x256xf32>
    %c56_66 = arith.constant 56 : index
    %c0_67 = arith.constant 0 : index
    %102 = vector.load %arg6[%c56_66, %c0_67] : memref<72x256xf32, #tpu.memory_space<vmem>>, vector<8x256xf32>
    tpu.vector_store %arg6[%c56_66, %c0_67], %101 {strides = array<i32>} : memref<72x256xf32, #tpu.memory_space<vmem>>, vector<8x256xf32>,
    %c239_i32_68 = arith.constant 239 : i32
    %103 = tpu.dynamic_rotate %66 by %c239_i32_68 dim 1 : vector<8x256xf32>, i32 -> vector<8x256xf32>
    %c7_69 = arith.constant 7 : index
    %c0_70 = arith.constant 0 : index
    %104 = vector.load %arg1[%c7_69, %c0_70] : memref<8x256xf32, #tpu.memory_space<vmem>>, vector<1x256xf32>
    %105 = vector.broadcast %104 : vector<1x256xf32> to vector<8x256xf32>
    %106 = arith.mulf %103, %105 : vector<8x256xf32>
    %c64_71 = arith.constant 64 : index
    %c0_72 = arith.constant 0 : index
    %107 = vector.load %arg6[%c64_71, %c0_72] : memref<72x256xf32, #tpu.memory_space<vmem>>, vector<8x256xf32>
    tpu.vector_store %arg6[%c64_71, %c0_72], %106 {strides = array<i32>} : memref<72x256xf32, #tpu.memory_space<vmem>>, vector<8x256xf32>,
    %c0_73 = arith.constant 0 : index
    %c0_74 = arith.constant 0 : index
    %108 = vector.load %arg4[%c0_73, %c0_74] : memref<8x72xf32, #tpu.memory_space<vmem>>, vector<8x72xf32>
    %c0_75 = arith.constant 0 : index
    %c0_76 = arith.constant 0 : index
    %109 = vector.load %arg6[%c0_75, %c0_76] : memref<72x256xf32, #tpu.memory_space<vmem>>, vector<72x256xf32>
    %cst_77 = arith.constant dense<0.000000e+00> : vector<8x256xf32>
    %110 = tpu.matmul %108, %109, %cst_77 {dimension_numbers = #tpu.dot_dimension_numbers<[1], [0], [0], [1], [0, 0, 1, 1], [], []>} : vector<8x72xf32>, vector<72x256xf32>, vector<8x256xf32> -> vector<8x256xf32>
    %cst_78 = arith.constant dense<0.000000e+00> : vector<8xf32>
    %111 = vector.multi_reduction <add>, %110, %cst_78 [1] : vector<8x256xf32> to vector<8xf32>
    %112 = vector.shape_cast %111 : vector<8xf32> to vector<8x1xf32>
    %cst_79 = arith.constant 3.906250e-03 : f32
    %113 = vector.broadcast %cst_79 : f32 to vector<8x1xf32>
    %114 = arith.mulf %112, %113 : vector<8x1xf32>
    %115 = vector.broadcast %114 : vector<8x1xf32> to vector<8x256xf32>
    %116 = arith.subf %110, %115 : vector<8x256xf32>
    %117 = arith.mulf %116, %116 : vector<8x256xf32>
    %cst_80 = arith.constant dense<0.000000e+00> : vector<8xf32>
    %118 = vector.multi_reduction <add>, %117, %cst_80 [1] : vector<8x256xf32> to vector<8xf32>
    %119 = vector.shape_cast %118 : vector<8xf32> to vector<8x1xf32>
    %cst_81 = arith.constant 3.906250e-03 : f32
    %120 = vector.broadcast %cst_81 : f32 to vector<8x1xf32>
    %121 = arith.mulf %119, %120 : vector<8x1xf32>
    %cst_82 = arith.constant 9.99999974E-6 : f32
    %122 = vector.broadcast %cst_82 : f32 to vector<8x1xf32>
    %123 = arith.addf %121, %122 : vector<8x1xf32>
    %124 = math.rsqrt %123 : vector<8x1xf32>
    %125 = vector.broadcast %124 : vector<8x1xf32> to vector<8x256xf32>
    %126 = arith.mulf %116, %125 : vector<8x256xf32>
    %127 = vector.extract_strided_slice %126 {offsets = [0, 0], sizes = [4, 256], strides = [1, 1]} : vector<8x256xf32> to vector<4x256xf32>
    %128 = arith.index_cast %c0_i32 : i32 to index
    %c0_83 = arith.constant 0 : index
    %c0_84 = arith.constant 0 : index
    %129 = vector.load %arg2[%128, %c0_83, %c0_84] : memref<2x4x256xf32, #tpu.memory_space<vmem>>, vector<1x4x256xf32>
    %130 = vector.shape_cast %129 : vector<1x4x256xf32> to vector<4x256xf32>
    %131 = arith.addf %127, %130 : vector<4x256xf32>
    %132 = arith.index_cast %c0_i32 : i32 to index
    %c0_85 = arith.constant 0 : index
    %c0_86 = arith.constant 0 : index
    %133 = vector.load %arg5[%132, %c0_85, %c0_86] : memref<2x4x256xf32, #tpu.memory_space<vmem>>, vector<1x4x256xf32>
    %134 = vector.shape_cast %133 : vector<1x4x256xf32> to vector<4x256xf32>
    %135 = vector.shape_cast %131 : vector<4x256xf32> to vector<1x4x256xf32>
    tpu.vector_store %arg5[%132, %c0_85, %c0_86], %135 {strides = array<i32>} : memref<2x4x256xf32, #tpu.memory_space<vmem>>, vector<1x4x256xf32>,
    %c1_i32_87 = arith.constant 1 : i32
    %136 = arith.index_cast %c1_i32_87 : i32 to index
    %c0_88 = arith.constant 0 : index
    %c0_89 = arith.constant 0 : index
    %137 = vector.load %arg2[%136, %c0_88, %c0_89] : memref<2x4x256xf32, #tpu.memory_space<vmem>>, vector<1x4x256xf32>
    %138 = vector.shape_cast %137 : vector<1x4x256xf32> to vector<4x256xf32>
    %139 = tpu.concatenate %138, %0 in 0 : vector<4x256xf32>, vector<4x256xf32> -> vector<8x256xf32>
    %c17_i32_90 = arith.constant 17 : i32
    %140 = tpu.dynamic_rotate %139 by %c17_i32_90 dim 1 : vector<8x256xf32>, i32 -> vector<8x256xf32>
    %c0_91 = arith.constant 0 : index
    %c0_92 = arith.constant 0 : index
    %141 = vector.load %arg1[%c0_91, %c0_92] : memref<8x256xf32, #tpu.memory_space<vmem>>, vector<1x256xf32>
    %142 = vector.broadcast %141 : vector<1x256xf32> to vector<8x256xf32>
    %143 = arith.mulf %140, %142 : vector<8x256xf32>
    %c0_93 = arith.constant 0 : index
    %c0_94 = arith.constant 0 : index
    %144 = vector.load %arg6[%c0_93, %c0_94] : memref<72x256xf32, #tpu.memory_space<vmem>>, vector<8x256xf32>
    tpu.vector_store %arg6[%c0_93, %c0_94], %143 {strides = array<i32>} : memref<72x256xf32, #tpu.memory_space<vmem>>, vector<8x256xf32>,
    %c16_i32_95 = arith.constant 16 : i32
    %145 = tpu.dynamic_rotate %139 by %c16_i32_95 dim 1 : vector<8x256xf32>, i32 -> vector<8x256xf32>
    %c1_96 = arith.constant 1 : index
    %c0_97 = arith.constant 0 : index
    %146 = vector.load %arg1[%c1_96, %c0_97] : memref<8x256xf32, #tpu.memory_space<vmem>>, vector<1x256xf32>
    %147 = vector.broadcast %146 : vector<1x256xf32> to vector<8x256xf32>
    %148 = arith.mulf %145, %147 : vector<8x256xf32>
    %c8_98 = arith.constant 8 : index
    %c0_99 = arith.constant 0 : index
    %149 = vector.load %arg6[%c8_98, %c0_99] : memref<72x256xf32, #tpu.memory_space<vmem>>, vector<8x256xf32>
    tpu.vector_store %arg6[%c8_98, %c0_99], %148 {strides = array<i32>} : memref<72x256xf32, #tpu.memory_space<vmem>>, vector<8x256xf32>,
    %c15_i32_100 = arith.constant 15 : i32
    %150 = tpu.dynamic_rotate %139 by %c15_i32_100 dim 1 : vector<8x256xf32>, i32 -> vector<8x256xf32>
    %c2_101 = arith.constant 2 : index
    %c0_102 = arith.constant 0 : index
    %151 = vector.load %arg1[%c2_101, %c0_102] : memref<8x256xf32, #tpu.memory_space<vmem>>, vector<1x256xf32>
    %152 = vector.broadcast %151 : vector<1x256xf32> to vector<8x256xf32>
    %153 = arith.mulf %150, %152 : vector<8x256xf32>
    %c16_103 = arith.constant 16 : index
    %c0_104 = arith.constant 0 : index
    %154 = vector.load %arg6[%c16_103, %c0_104] : memref<72x256xf32, #tpu.memory_space<vmem>>, vector<8x256xf32>
    tpu.vector_store %arg6[%c16_103, %c0_104], %153 {strides = array<i32>} : memref<72x256xf32, #tpu.memory_space<vmem>>, vector<8x256xf32>,
    %c1_i32_105 = arith.constant 1 : i32
    %155 = tpu.dynamic_rotate %139 by %c1_i32_105 dim 1 : vector<8x256xf32>, i32 -> vector<8x256xf32>
    %c3_106 = arith.constant 3 : index
    %c0_107 = arith.constant 0 : index
    %156 = vector.load %arg1[%c3_106, %c0_107] : memref<8x256xf32, #tpu.memory_space<vmem>>, vector<1x256xf32>
    %157 = vector.broadcast %156 : vector<1x256xf32> to vector<8x256xf32>
    %158 = arith.mulf %155, %157 : vector<8x256xf32>
    %c24_108 = arith.constant 24 : index
    %c0_109 = arith.constant 0 : index
    %159 = vector.load %arg6[%c24_108, %c0_109] : memref<72x256xf32, #tpu.memory_space<vmem>>, vector<8x256xf32>
    tpu.vector_store %arg6[%c24_108, %c0_109], %158 {strides = array<i32>} : memref<72x256xf32, #tpu.memory_space<vmem>>, vector<8x256xf32>,
    %c32_110 = arith.constant 32 : index
    %c0_111 = arith.constant 0 : index
    %160 = vector.load %arg6[%c32_110, %c0_111] : memref<72x256xf32, #tpu.memory_space<vmem>>, vector<8x256xf32>
    tpu.vector_store %arg6[%c32_110, %c0_111], %139 {strides = array<i32>} : memref<72x256xf32, #tpu.memory_space<vmem>>, vector<8x256xf32>,
    %c255_i32_112 = arith.constant 255 : i32
    %161 = tpu.dynamic_rotate %139 by %c255_i32_112 dim 1 : vector<8x256xf32>, i32 -> vector<8x256xf32>
    %c4_113 = arith.constant 4 : index
    %c0_114 = arith.constant 0 : index
    %162 = vector.load %arg1[%c4_113, %c0_114] : memref<8x256xf32, #tpu.memory_space<vmem>>, vector<1x256xf32>
    %163 = vector.broadcast %162 : vector<1x256xf32> to vector<8x256xf32>
    %164 = arith.mulf %161, %163 : vector<8x256xf32>
    %c40_115 = arith.constant 40 : index
    %c0_116 = arith.constant 0 : index
    %165 = vector.load %arg6[%c40_115, %c0_116] : memref<72x256xf32, #tpu.memory_space<vmem>>, vector<8x256xf32>
    tpu.vector_store %arg6[%c40_115, %c0_116], %164 {strides = array<i32>} : memref<72x256xf32, #tpu.memory_space<vmem>>, vector<8x256xf32>,
    %c241_i32_117 = arith.constant 241 : i32
    %166 = tpu.dynamic_rotate %139 by %c241_i32_117 dim 1 : vector<8x256xf32>, i32 -> vector<8x256xf32>
    %c5_118 = arith.constant 5 : index
    %c0_119 = arith.constant 0 : index
    %167 = vector.load %arg1[%c5_118, %c0_119] : memref<8x256xf32, #tpu.memory_space<vmem>>, vector<1x256xf32>
    %168 = vector.broadcast %167 : vector<1x256xf32> to vector<8x256xf32>
    %169 = arith.mulf %166, %168 : vector<8x256xf32>
    %c48_120 = arith.constant 48 : index
    %c0_121 = arith.constant 0 : index
    %170 = vector.load %arg6[%c48_120, %c0_121] : memref<72x256xf32, #tpu.memory_space<vmem>>, vector<8x256xf32>
    tpu.vector_store %arg6[%c48_120, %c0_121], %169 {strides = array<i32>} : memref<72x256xf32, #tpu.memory_space<vmem>>, vector<8x256xf32>,
    %c240_i32_122 = arith.constant 240 : i32
    %171 = tpu.dynamic_rotate %139 by %c240_i32_122 dim 1 : vector<8x256xf32>, i32 -> vector<8x256xf32>
    %c6_123 = arith.constant 6 : index
    %c0_124 = arith.constant 0 : index
    %172 = vector.load %arg1[%c6_123, %c0_124] : memref<8x256xf32, #tpu.memory_space<vmem>>, vector<1x256xf32>
    %173 = vector.broadcast %172 : vector<1x256xf32> to vector<8x256xf32>
    %174 = arith.mulf %171, %173 : vector<8x256xf32>
    %c56_125 = arith.constant 56 : index
    %c0_126 = arith.constant 0 : index
    %175 = vector.load %arg6[%c56_125, %c0_126] : memref<72x256xf32, #tpu.memory_space<vmem>>, vector<8x256xf32>
    tpu.vector_store %arg6[%c56_125, %c0_126], %174 {strides = array<i32>} : memref<72x256xf32, #tpu.memory_space<vmem>>, vector<8x256xf32>,
    %c239_i32_127 = arith.constant 239 : i32
    %176 = tpu.dynamic_rotate %139 by %c239_i32_127 dim 1 : vector<8x256xf32>, i32 -> vector<8x256xf32>
    %c7_128 = arith.constant 7 : index
    %c0_129 = arith.constant 0 : index
    %177 = vector.load %arg1[%c7_128, %c0_129] : memref<8x256xf32, #tpu.memory_space<vmem>>, vector<1x256xf32>
    %178 = vector.broadcast %177 : vector<1x256xf32> to vector<8x256xf32>
    %179 = arith.mulf %176, %178 : vector<8x256xf32>
    %c64_130 = arith.constant 64 : index
    %c0_131 = arith.constant 0 : index
    %180 = vector.load %arg6[%c64_130, %c0_131] : memref<72x256xf32, #tpu.memory_space<vmem>>, vector<8x256xf32>
    tpu.vector_store %arg6[%c64_130, %c0_131], %179 {strides = array<i32>} : memref<72x256xf32, #tpu.memory_space<vmem>>, vector<8x256xf32>,
    %c0_132 = arith.constant 0 : index
    %c0_133 = arith.constant 0 : index
    %181 = vector.load %arg3[%c0_132, %c0_133] : memref<8x72xf32, #tpu.memory_space<vmem>>, vector<8x72xf32>
    %c0_134 = arith.constant 0 : index
    %c0_135 = arith.constant 0 : index
    %182 = vector.load %arg6[%c0_134, %c0_135] : memref<72x256xf32, #tpu.memory_space<vmem>>, vector<72x256xf32>
    %cst_136 = arith.constant dense<0.000000e+00> : vector<8x256xf32>
    %183 = tpu.matmul %181, %182, %cst_136 {dimension_numbers = #tpu.dot_dimension_numbers<[1], [0], [0], [1], [0, 0, 1, 1], [], []>} : vector<8x72xf32>, vector<72x256xf32>, vector<8x256xf32> -> vector<8x256xf32>
    %cst_137 = arith.constant dense<0.000000e+00> : vector<8xf32>
    %184 = vector.multi_reduction <add>, %183, %cst_137 [1] : vector<8x256xf32> to vector<8xf32>
    %185 = vector.shape_cast %184 : vector<8xf32> to vector<8x1xf32>
    %cst_138 = arith.constant 3.906250e-03 : f32
    %186 = vector.broadcast %cst_138 : f32 to vector<8x1xf32>
    %187 = arith.mulf %185, %186 : vector<8x1xf32>
    %188 = vector.broadcast %187 : vector<8x1xf32> to vector<8x256xf32>
    %189 = arith.subf %183, %188 : vector<8x256xf32>
    %190 = arith.mulf %189, %189 : vector<8x256xf32>
    %cst_139 = arith.constant dense<0.000000e+00> : vector<8xf32>
    %191 = vector.multi_reduction <add>, %190, %cst_139 [1] : vector<8x256xf32> to vector<8xf32>
    %192 = vector.shape_cast %191 : vector<8xf32> to vector<8x1xf32>
    %cst_140 = arith.constant 3.906250e-03 : f32
    %193 = vector.broadcast %cst_140 : f32 to vector<8x1xf32>
    %194 = arith.mulf %192, %193 : vector<8x1xf32>
    %cst_141 = arith.constant 9.99999974E-6 : f32
    %195 = vector.broadcast %cst_141 : f32 to vector<8x1xf32>
    %196 = arith.addf %194, %195 : vector<8x1xf32>
    %197 = math.rsqrt %196 : vector<8x1xf32>
    %198 = vector.broadcast %197 : vector<8x1xf32> to vector<8x256xf32>
    %199 = arith.mulf %189, %198 : vector<8x256xf32>
    %cst_142 = arith.constant 0.000000e+00 : f32
    %200 = vector.broadcast %cst_142 : f32 to vector<8x256xf32>
    %201 = arith.maximumf %199, %200 : vector<8x256xf32>
    %c17_i32_143 = arith.constant 17 : i32
    %202 = tpu.dynamic_rotate %201 by %c17_i32_143 dim 1 : vector<8x256xf32>, i32 -> vector<8x256xf32>
    %c0_144 = arith.constant 0 : index
    %c0_145 = arith.constant 0 : index
    %203 = vector.load %arg1[%c0_144, %c0_145] : memref<8x256xf32, #tpu.memory_space<vmem>>, vector<1x256xf32>
    %204 = vector.broadcast %203 : vector<1x256xf32> to vector<8x256xf32>
    %205 = arith.mulf %202, %204 : vector<8x256xf32>
    %c0_146 = arith.constant 0 : index
    %c0_147 = arith.constant 0 : index
    %206 = vector.load %arg6[%c0_146, %c0_147] : memref<72x256xf32, #tpu.memory_space<vmem>>, vector<8x256xf32>
    tpu.vector_store %arg6[%c0_146, %c0_147], %205 {strides = array<i32>} : memref<72x256xf32, #tpu.memory_space<vmem>>, vector<8x256xf32>,
    %c16_i32_148 = arith.constant 16 : i32
    %207 = tpu.dynamic_rotate %201 by %c16_i32_148 dim 1 : vector<8x256xf32>, i32 -> vector<8x256xf32>
    %c1_149 = arith.constant 1 : index
    %c0_150 = arith.constant 0 : index
    %208 = vector.load %arg1[%c1_149, %c0_150] : memref<8x256xf32, #tpu.memory_space<vmem>>, vector<1x256xf32>
    %209 = vector.broadcast %208 : vector<1x256xf32> to vector<8x256xf32>
    %210 = arith.mulf %207, %209 : vector<8x256xf32>
    %c8_151 = arith.constant 8 : index
    %c0_152 = arith.constant 0 : index
    %211 = vector.load %arg6[%c8_151, %c0_152] : memref<72x256xf32, #tpu.memory_space<vmem>>, vector<8x256xf32>
    tpu.vector_store %arg6[%c8_151, %c0_152], %210 {strides = array<i32>} : memref<72x256xf32, #tpu.memory_space<vmem>>, vector<8x256xf32>,
    %c15_i32_153 = arith.constant 15 : i32
    %212 = tpu.dynamic_rotate %201 by %c15_i32_153 dim 1 : vector<8x256xf32>, i32 -> vector<8x256xf32>
    %c2_154 = arith.constant 2 : index
    %c0_155 = arith.constant 0 : index
    %213 = vector.load %arg1[%c2_154, %c0_155] : memref<8x256xf32, #tpu.memory_space<vmem>>, vector<1x256xf32>
    %214 = vector.broadcast %213 : vector<1x256xf32> to vector<8x256xf32>
    %215 = arith.mulf %212, %214 : vector<8x256xf32>
    %c16_156 = arith.constant 16 : index
    %c0_157 = arith.constant 0 : index
    %216 = vector.load %arg6[%c16_156, %c0_157] : memref<72x256xf32, #tpu.memory_space<vmem>>, vector<8x256xf32>
    tpu.vector_store %arg6[%c16_156, %c0_157], %215 {strides = array<i32>} : memref<72x256xf32, #tpu.memory_space<vmem>>, vector<8x256xf32>,
    %c1_i32_158 = arith.constant 1 : i32
    %217 = tpu.dynamic_rotate %201 by %c1_i32_158 dim 1 : vector<8x256xf32>, i32 -> vector<8x256xf32>
    %c3_159 = arith.constant 3 : index
    %c0_160 = arith.constant 0 : index
    %218 = vector.load %arg1[%c3_159, %c0_160] : memref<8x256xf32, #tpu.memory_space<vmem>>, vector<1x256xf32>
    %219 = vector.broadcast %218 : vector<1x256xf32> to vector<8x256xf32>
    %220 = arith.mulf %217, %219 : vector<8x256xf32>
    %c24_161 = arith.constant 24 : index
    %c0_162 = arith.constant 0 : index
    %221 = vector.load %arg6[%c24_161, %c0_162] : memref<72x256xf32, #tpu.memory_space<vmem>>, vector<8x256xf32>
    tpu.vector_store %arg6[%c24_161, %c0_162], %220 {strides = array<i32>} : memref<72x256xf32, #tpu.memory_space<vmem>>, vector<8x256xf32>,
    %c32_163 = arith.constant 32 : index
    %c0_164 = arith.constant 0 : index
    %222 = vector.load %arg6[%c32_163, %c0_164] : memref<72x256xf32, #tpu.memory_space<vmem>>, vector<8x256xf32>
    tpu.vector_store %arg6[%c32_163, %c0_164], %201 {strides = array<i32>} : memref<72x256xf32, #tpu.memory_space<vmem>>, vector<8x256xf32>,
    %c255_i32_165 = arith.constant 255 : i32
    %223 = tpu.dynamic_rotate %201 by %c255_i32_165 dim 1 : vector<8x256xf32>, i32 -> vector<8x256xf32>
    %c4_166 = arith.constant 4 : index
    %c0_167 = arith.constant 0 : index
    %224 = vector.load %arg1[%c4_166, %c0_167] : memref<8x256xf32, #tpu.memory_space<vmem>>, vector<1x256xf32>
    %225 = vector.broadcast %224 : vector<1x256xf32> to vector<8x256xf32>
    %226 = arith.mulf %223, %225 : vector<8x256xf32>
    %c40_168 = arith.constant 40 : index
    %c0_169 = arith.constant 0 : index
    %227 = vector.load %arg6[%c40_168, %c0_169] : memref<72x256xf32, #tpu.memory_space<vmem>>, vector<8x256xf32>
    tpu.vector_store %arg6[%c40_168, %c0_169], %226 {strides = array<i32>} : memref<72x256xf32, #tpu.memory_space<vmem>>, vector<8x256xf32>,
    %c241_i32_170 = arith.constant 241 : i32
    %228 = tpu.dynamic_rotate %201 by %c241_i32_170 dim 1 : vector<8x256xf32>, i32 -> vector<8x256xf32>
    %c5_171 = arith.constant 5 : index
    %c0_172 = arith.constant 0 : index
    %229 = vector.load %arg1[%c5_171, %c0_172] : memref<8x256xf32, #tpu.memory_space<vmem>>, vector<1x256xf32>
    %230 = vector.broadcast %229 : vector<1x256xf32> to vector<8x256xf32>
    %231 = arith.mulf %228, %230 : vector<8x256xf32>
    %c48_173 = arith.constant 48 : index
    %c0_174 = arith.constant 0 : index
    %232 = vector.load %arg6[%c48_173, %c0_174] : memref<72x256xf32, #tpu.memory_space<vmem>>, vector<8x256xf32>
    tpu.vector_store %arg6[%c48_173, %c0_174], %231 {strides = array<i32>} : memref<72x256xf32, #tpu.memory_space<vmem>>, vector<8x256xf32>,
    %c240_i32_175 = arith.constant 240 : i32
    %233 = tpu.dynamic_rotate %201 by %c240_i32_175 dim 1 : vector<8x256xf32>, i32 -> vector<8x256xf32>
    %c6_176 = arith.constant 6 : index
    %c0_177 = arith.constant 0 : index
    %234 = vector.load %arg1[%c6_176, %c0_177] : memref<8x256xf32, #tpu.memory_space<vmem>>, vector<1x256xf32>
    %235 = vector.broadcast %234 : vector<1x256xf32> to vector<8x256xf32>
    %236 = arith.mulf %233, %235 : vector<8x256xf32>
    %c56_178 = arith.constant 56 : index
    %c0_179 = arith.constant 0 : index
    %237 = vector.load %arg6[%c56_178, %c0_179] : memref<72x256xf32, #tpu.memory_space<vmem>>, vector<8x256xf32>
    tpu.vector_store %arg6[%c56_178, %c0_179], %236 {strides = array<i32>} : memref<72x256xf32, #tpu.memory_space<vmem>>, vector<8x256xf32>,
    %c239_i32_180 = arith.constant 239 : i32
    %238 = tpu.dynamic_rotate %201 by %c239_i32_180 dim 1 : vector<8x256xf32>, i32 -> vector<8x256xf32>
    %c7_181 = arith.constant 7 : index
    %c0_182 = arith.constant 0 : index
    %239 = vector.load %arg1[%c7_181, %c0_182] : memref<8x256xf32, #tpu.memory_space<vmem>>, vector<1x256xf32>
    %240 = vector.broadcast %239 : vector<1x256xf32> to vector<8x256xf32>
    %241 = arith.mulf %238, %240 : vector<8x256xf32>
    %c64_183 = arith.constant 64 : index
    %c0_184 = arith.constant 0 : index
    %242 = vector.load %arg6[%c64_183, %c0_184] : memref<72x256xf32, #tpu.memory_space<vmem>>, vector<8x256xf32>
    tpu.vector_store %arg6[%c64_183, %c0_184], %241 {strides = array<i32>} : memref<72x256xf32, #tpu.memory_space<vmem>>, vector<8x256xf32>,
    %c0_185 = arith.constant 0 : index
    %c0_186 = arith.constant 0 : index
    %243 = vector.load %arg4[%c0_185, %c0_186] : memref<8x72xf32, #tpu.memory_space<vmem>>, vector<8x72xf32>
    %c0_187 = arith.constant 0 : index
    %c0_188 = arith.constant 0 : index
    %244 = vector.load %arg6[%c0_187, %c0_188] : memref<72x256xf32, #tpu.memory_space<vmem>>, vector<72x256xf32>
    %cst_189 = arith.constant dense<0.000000e+00> : vector<8x256xf32>
    %245 = tpu.matmul %243, %244, %cst_189 {dimension_numbers = #tpu.dot_dimension_numbers<[1], [0], [0], [1], [0, 0, 1, 1], [], []>} : vector<8x72xf32>, vector<72x256xf32>, vector<8x256xf32> -> vector<8x256xf32>
    %cst_190 = arith.constant dense<0.000000e+00> : vector<8xf32>
    %246 = vector.multi_reduction <add>, %245, %cst_190 [1] : vector<8x256xf32> to vector<8xf32>
    %247 = vector.shape_cast %246 : vector<8xf32> to vector<8x1xf32>
    %cst_191 = arith.constant 3.906250e-03 : f32
    %248 = vector.broadcast %cst_191 : f32 to vector<8x1xf32>
    %249 = arith.mulf %247, %248 : vector<8x1xf32>
    %250 = vector.broadcast %249 : vector<8x1xf32> to vector<8x256xf32>
    %251 = arith.subf %245, %250 : vector<8x256xf32>
    %252 = arith.mulf %251, %251 : vector<8x256xf32>
    %cst_192 = arith.constant dense<0.000000e+00> : vector<8xf32>
    %253 = vector.multi_reduction <add>, %252, %cst_192 [1] : vector<8x256xf32> to vector<8xf32>
    %254 = vector.shape_cast %253 : vector<8xf32> to vector<8x1xf32>
    %cst_193 = arith.constant 3.906250e-03 : f32
    %255 = vector.broadcast %cst_193 : f32 to vector<8x1xf32>
    %256 = arith.mulf %254, %255 : vector<8x1xf32>
    %cst_194 = arith.constant 9.99999974E-6 : f32
    %257 = vector.broadcast %cst_194 : f32 to vector<8x1xf32>
    %258 = arith.addf %256, %257 : vector<8x1xf32>
    %259 = math.rsqrt %258 : vector<8x1xf32>
    %260 = vector.broadcast %259 : vector<8x1xf32> to vector<8x256xf32>
    %261 = arith.mulf %251, %260 : vector<8x256xf32>
    %262 = vector.extract_strided_slice %261 {offsets = [0, 0], sizes = [4, 256], strides = [1, 1]} : vector<8x256xf32> to vector<4x256xf32>
    %263 = arith.index_cast %c1_i32_87 : i32 to index
    %c0_195 = arith.constant 0 : index
    %c0_196 = arith.constant 0 : index
    %264 = vector.load %arg2[%263, %c0_195, %c0_196] : memref<2x4x256xf32, #tpu.memory_space<vmem>>, vector<1x4x256xf32>
    %265 = vector.shape_cast %264 : vector<1x4x256xf32> to vector<4x256xf32>
    %266 = arith.addf %262, %265 : vector<4x256xf32>
    %267 = arith.index_cast %c1_i32_87 : i32 to index
    %c0_197 = arith.constant 0 : index
    %c0_198 = arith.constant 0 : index
    %268 = vector.load %arg5[%267, %c0_197, %c0_198] : memref<2x4x256xf32, #tpu.memory_space<vmem>>, vector<1x4x256xf32>
    %269 = vector.shape_cast %268 : vector<1x4x256xf32> to vector<4x256xf32>
    %270 = vector.shape_cast %266 : vector<4x256xf32> to vector<1x4x256xf32>
    tpu.vector_store %arg5[%267, %c0_197, %c0_198], %270 {strides = array<i32>} : memref<2x4x256xf32, #tpu.memory_space<vmem>>, vector<1x4x256xf32>,
    %c2_i32 = arith.constant 2 : i32
    return
  }
  func.func @transform_0(%arg0: i32) -> (i32, i32) {
    %c0_i32 = arith.constant 0 : i32
    %c0_i32_0 = arith.constant 0 : i32
    %c0_i32_1 = arith.constant 0 : i32
    return %c0_i32, %c0_i32_0 : i32, i32
  }
  func.func @transform_1(%arg0: i32) -> (i32, i32, i32) {
    %c0_i32 = arith.constant 0 : i32
    %c0_i32_0 = arith.constant 0 : i32
    %c0_i32_1 = arith.constant 0 : i32
    return %arg0, %c0_i32, %c0_i32_0 : i32, i32, i32
  }
  func.func @transform_2(%arg0: i32) -> (i32, i32) {
    %c0_i32 = arith.constant 0 : i32
    %c0_i32_0 = arith.constant 0 : i32
    %c0_i32_1 = arith.constant 0 : i32
    return %c0_i32, %c0_i32_0 : i32, i32
  }
  func.func @transform_3(%arg0: i32) -> (i32, i32) {
    %c0_i32 = arith.constant 0 : i32
    %c0_i32_0 = arith.constant 0 : i32
    %c0_i32_1 = arith.constant 0 : i32
    return %c0_i32, %c0_i32_0 : i32, i32
  }
  func.func @transform_4(%arg0: i32) -> (i32, i32, i32) {
    %c0_i32 = arith.constant 0 : i32
    %c0_i32_0 = arith.constant 0 : i32
    %c0_i32_1 = arith.constant 0 : i32
    return %arg0, %c0_i32, %c0_i32_0 : i32, i32, i32
  }
}

</mosaic_0001>

<llo_original>
// kernel: tpu_custom_call.1
$region0: #{tpu_custom_call.1}
  #allocation0 [shape = 'u32[]', space=smem, size = 0x4, offset = 0x4, fixed_abs, tag = 'smem constant byte address 0x4 - core index']
  #allocation1 [shape = 'u32[72,128]{1,0:T(1,128)}', space=vmem, size = 0x9000, scoped, tag = 'internal scratch']
  #allocation2 [shape = 'f32[72,256]{1,0:T(8,128)}', space=vmem, size = 0x12000, scoped, tag = 'scratch operand']
  %s0 = inlined_call_operand.hbm [shape: f32[8,256], index: 0, kind: input, shape index: {}]
  %s1 = inlined_call_operand.hbm [shape: f32[2,4,256], index: 1, kind: input, shape index: {}]
  %s2 = inlined_call_operand.hbm [shape: f32[8,72], index: 2, kind: input, shape index: {}]
  %s3 = inlined_call_operand.hbm [shape: f32[8,72], index: 3, kind: input, shape index: {}]
  %s4 = inlined_call_operand.hbm [shape: f32[2,4,256], index: 4, kind: output, shape index: {}]
  %s5 = sld [smem:[#allocation0]]
  $region42: #{tpu_custom_call.1} parent=0
    _
  %s7 = ssub.s32 1, %s5
  %s8 = scalar_select 0, %s7, %s5
  $region1: #{tpu_custom_call.1} parent=0
    #allocation3 [shape = 'u8[8192]{0}', space=vmem, size = 0x2000, scoped, tag = 'input window, operand 0, single buffered']
    #allocation4 [shape = 's32[1]{0}', space=sflag, size = 0x4, scoped, tag = 'scoped memory for tpu_custom_call.1']
    #allocation5 [shape = 's32[1]{0}', space=sflag, size = 0x4, scoped, tag = 'scoped memory for tpu_custom_call.1']
    #allocation6 [shape = 'u8[8192]{0}', space=vmem, size = 0x2000, scoped, tag = 'input window, operand 1, single buffered']
    #allocation7 [shape = 's32[1]{0}', space=sflag, size = 0x4, scoped, tag = 'scoped memory for tpu_custom_call.1']
    #allocation8 [shape = 'u8[4096]{0}', space=vmem, size = 0x1000, scoped, tag = 'input window, operand 2, single buffered']
    #allocation9 [shape = 'u8[4096]{0}', space=vmem, size = 0x1000, scoped, tag = 'input window, operand 3, single buffered']
    #allocation10 [shape = 's32[1]{0}', space=sflag, size = 0x4, scoped, tag = 'scoped memory for tpu_custom_call.1']
    #allocation11 [shape = 'u8[8192]{0}', space=vmem, size = 0x2000, scoped, tag = 'output window, operand 0, single buffered']
    %9 = vsyncpa [#allocation4], 0
    %10 = vsyncpa [#allocation7], 0
    %11 = vsyncpa [#allocation10], 0
    %12 = vsyncpa [#allocation5], 0
    // Predicated region
    $region2: #{tpu_custom_call.1} parent=1 // pred_check
      _
    $region3: #{tpu_custom_call.1} parent=1 // pred_check_branch
      %14 = sbr.rel (0) target = $region5
    $region4: #{tpu_custom_call.1} parent=1 // pred_region
      %16 = vsyncadd [#allocation4], 0
      %s18 = sshll.u32 %s0, 4
      %s19 = int_to_ptr.hbm [resolvable:$true] %s18
      %s20 = sshll.u32 [#allocation3], 4
      %s21 = int_to_ptr.vmem [resolvable:$true] %s20
      %23 = dma.hbm_to_vmem [thread:$0]  %s19, 256, %s21, [#allocation4]
    $region5: #{tpu_custom_call.1} parent=1 // pred_fallthru
      _
    // Predicated region
    $region6: #{tpu_custom_call.1} parent=1 // pred_check
      _
    $region7: #{tpu_custom_call.1} parent=1 // pred_check_branch
      %25 = sbr.rel (0) target = $region9
    $region8: #{tpu_custom_call.1} parent=1 // pred_region
      %27 = vsyncadd [#allocation7], 0
      %s28 = sshll.u32 %s1, 4
      %s29 = int_to_ptr.hbm [resolvable:$true] %s28
      %s30 = sshll.u32 [#allocation6], 4
      %s31 = int_to_ptr.vmem [resolvable:$true] %s30
      %36 = dma.hbm_to_vmem [thread:$0]  %s29, 256, %s31, [#allocation7], 128, 128, 8
    $region9: #{tpu_custom_call.1} parent=1 // pred_fallthru
      _
    // Predicated region
    $region10: #{tpu_custom_call.1} parent=1 // pred_check
      _
    $region11: #{tpu_custom_call.1} parent=1 // pred_check_branch
      %38 = sbr.rel (0) target = $region13
    $region12: #{tpu_custom_call.1} parent=1 // pred_region
      %40 = vsyncadd [#allocation7], 0
      %s42 = sshll.u32 %s2, 4
      %s43 = int_to_ptr.hbm [resolvable:$true] %s42
      %s44 = sshll.u32 [#allocation8], 4
      %s45 = int_to_ptr.vmem [resolvable:$true] %s44
      %47 = dma.hbm_to_vmem [thread:$0]  %s43, 128, %s45, [#allocation7]
    $region13: #{tpu_custom_call.1} parent=1 // pred_fallthru
      _
    // Predicated region
    $region14: #{tpu_custom_call.1} parent=1 // pred_check
      _
    $region15: #{tpu_custom_call.1} parent=1 // pred_check_branch
      %49 = sbr.rel (0) target = $region17
    $region16: #{tpu_custom_call.1} parent=1 // pred_region
      %51 = vsyncadd [#allocation10], 0
      %s53 = sshll.u32 %s3, 4
      %s54 = int_to_ptr.hbm [resolvable:$true] %s53
      %s55 = sshll.u32 [#allocation9], 4
      %s56 = int_to_ptr.vmem [resolvable:$true] %s55
      %58 = dma.hbm_to_vmem [thread:$0]  %s54, 128, %s56, [#allocation10]
    $region17: #{tpu_custom_call.1} parent=1 // pred_fallthru
      _
    // Predicated region
    $region18: #{tpu_custom_call.1} parent=1 // pred_check
      _
    $region19: #{tpu_custom_call.1} parent=1 // pred_check_branch
      %60 = sbr.rel (0) target = $region21
    $region20: #{tpu_custom_call.1} parent=1 // pred_region
      %62 = dma.done [#allocation4], 256
    $region21: #{tpu_custom_call.1} parent=1 // pred_fallthru
      _
    // Predicated region
    $region22: #{tpu_custom_call.1} parent=1 // pred_check
      _
    $region23: #{tpu_custom_call.1} parent=1 // pred_check_branch
      %64 = sbr.rel (0) target = $region25
    $region24: #{tpu_custom_call.1} parent=1 // pred_region
      %66 = dma.done [#allocation7], 256
    $region25: #{tpu_custom_call.1} parent=1 // pred_fallthru
      _
    // Predicated region
    $region26: #{tpu_custom_call.1} parent=1 // pred_check
      _
    $region27: #{tpu_custom_call.1} parent=1 // pred_check_branch
      %68 = sbr.rel (0) target = $region29
    $region28: #{tpu_custom_call.1} parent=1 // pred_region
      %70 = dma.done [#allocation7], 128
    $region29: #{tpu_custom_call.1} parent=1 // pred_fallthru
      _
    // Predicated region
    $region30: #{tpu_custom_call.1} parent=1 // pred_check
      _
    $region31: #{tpu_custom_call.1} parent=1 // pred_check_branch
      %72 = sbr.rel (0) target = $region33
    $region32: #{tpu_custom_call.1} parent=1 // pred_region
      %74 = dma.done [#allocation10], 128
    $region33: #{tpu_custom_call.1} parent=1 // pred_fallthru
      _
    %v75 = vld [vmem:[#allocation6] sm:$0xff]
    %77 = vst [vmem:[#allocation1] ss:$2 sm:$0xff] %v75
    %v78 = vld.sshfl [vmem:[#allocation1] sm:$0xff pattern:$0x75316420]
    %v79 = vld.sshfl [vmem:[#allocation1 + $0x8] sm:$0xff pattern:$0x75316420]
    %vm82 = vcmask 1043456
    %v83 = vsel %vm82, %v78, 0.0
    %v84 = vsel %vm82, %v79, 0.0
    %85 = vrot.lane.b32.xlu0 %v83, 17
    %v86 = vpop.permute.xlu0 %85
    %87 = vrot.lane.b32.xlu0 %v84, 17
    %v88 = vpop.permute.xlu0 %87
    %v89 = vlaneseq
    %v90 = vand.u32 %v89, 127
    %vm91 = vcmp.lt.s32.totalorder %v90, 17
    %v92 = vsel %vm91, %v86, %v88
    %v93 = vsel %vm91, %v88, %v86
    %v94 = vld [vmem:[#allocation3] ss:$8 sm:$0x3]
    %v96 = vperm.slane %v94, 0
    %v97 = vperm.slane %v94, 1
    %v100 = vmul.f32 %v93, %v96
    %v101 = vmul.f32 %v92, %v97
    %102 = vst [vmem:[#allocation2] sm:$0xff] %v100
    %103 = vst [vmem:[#allocation2 + $0x8] sm:$0xff] %v101
    %104 = vrot.lane.b32.xlu0 %v83, 16
    %v105 = vpop.permute.xlu0 %104
    %106 = vrot.lane.b32.xlu0 %v84, 16
    %v107 = vpop.permute.xlu0 %106
    %vm108 = vcmp.lt.s32.totalorder %v90, 16
    %v109 = vsel %vm108, %v105, %v107
    %v110 = vsel %vm108, %v107, %v105
    %s111 = scalar_lea.vmem [#allocation3], 1
    %v112 = vld [vmem:[%s111] ss:$8 sm:$0x3]
    %v114 = vperm.slane %v112, 0
    %v115 = vperm.slane %v112, 1
    %v118 = vmul.f32 %v110, %v114
    %v119 = vmul.f32 %v109, %v115
    %120 = vst [vmem:[#allocation2 + $0x10] sm:$0xff] %v118
    %121 = vst [vmem:[#allocation2 + $0x18] sm:$0xff] %v119
    %122 = vrot.lane.b32.xlu0 %v83, 15
    %v123 = vpop.permute.xlu0 %122
    %124 = vrot.lane.b32.xlu0 %v84, 15
    %v125 = vpop.permute.xlu0 %124
    %vm126 = vcmp.lt.s32.totalorder %v90, 15
    %v127 = vsel %vm126, %v123, %v125
    %v128 = vsel %vm126, %v125, %v123
    %s129 = scalar_lea.vmem [#allocation3], 2
    %v130 = vld [vmem:[%s129] ss:$8 sm:$0x3]
    %v132 = vperm.slane %v130, 0
    %v133 = vperm.slane %v130, 1
    %v136 = vmul.f32 %v128, %v132
    %v137 = vmul.f32 %v127, %v133
    %138 = vst [vmem:[#allocation2 + $0x20] sm:$0xff] %v136
    %139 = vst [vmem:[#allocation2 + $0x28] sm:$0xff] %v137
    %140 = vrot.lane.b32.xlu0 %v83, 1
    %v141 = vpop.permute.xlu0 %140
    %142 = vrot.lane.b32.xlu0 %v84, 1
    %v143 = vpop.permute.xlu0 %142
    %vm144 = vcmp.lt.s32.totalorder %v90, 1
    %v145 = vsel %vm144, %v141, %v143
    %v146 = vsel %vm144, %v143, %v141
    %s147 = scalar_lea.vmem [#allocation3], 3
    %v148 = vld [vmem:[%s147] ss:$8 sm:$0x3]
    %v150 = vperm.slane %v148, 0
    %v151 = vperm.slane %v148, 1
    %v154 = vmul.f32 %v146, %v150
    %v155 = vmul.f32 %v145, %v151
    %156 = vst [vmem:[#allocation2 + $0x30] sm:$0xff] %v154
    %157 = vst [vmem:[#allocation2 + $0x38] sm:$0xff] %v155
    %158 = vst [vmem:[#allocation2 + $0x40] sm:$0xff] %v83
    %159 = vst [vmem:[#allocation2 + $0x48] sm:$0xff] %v84
    %160 = vrot.lane.b32.xlu0 %v83, 127
    %v161 = vpop.permute.xlu0 %160
    %162 = vrot.lane.b32.xlu0 %v84, 127
    %v163 = vpop.permute.xlu0 %162
    %vm164 = vcmp.lt.s32.totalorder %v90, 127
    %v165 = vsel %vm164, %v161, %v163
    %v166 = vsel %vm164, %v163, %v161
    %s167 = scalar_lea.vmem [#allocation3], 4
    %v168 = vld [vmem:[%s167] ss:$8 sm:$0x3]
    %v170 = vperm.slane %v168, 0
    %v171 = vperm.slane %v168, 1
    %v174 = vmul.f32 %v165, %v170
    %v175 = vmul.f32 %v166, %v171
    %176 = vst [vmem:[#allocation2 + $0x50] sm:$0xff] %v174
    %177 = vst [vmem:[#allocation2 + $0x58] sm:$0xff] %v175
    %178 = vrot.lane.b32.xlu0 %v83, 113
    %v179 = vpop.permute.xlu0 %178
    %180 = vrot.lane.b32.xlu0 %v84, 113
    %v181 = vpop.permute.xlu0 %180
    %vm182 = vcmp.lt.s32.totalorder %v90, 113
    %v183 = vsel %vm182, %v179, %v181
    %v184 = vsel %vm182, %v181, %v179
    %s185 = scalar_lea.vmem [#allocation3], 5
    %v186 = vld [vmem:[%s185] ss:$8 sm:$0x3]
    %v188 = vperm.slane %v186, 0
    %v189 = vperm.slane %v186, 1
    %v192 = vmul.f32 %v183, %v188
    %v193 = vmul.f32 %v184, %v189
    %194 = vst [vmem:[#allocation2 + $0x60] sm:$0xff] %v192
    %195 = vst [vmem:[#allocation2 + $0x68] sm:$0xff] %v193
    %196 = vrot.lane.b32.xlu0 %v83, 112
    %v197 = vpop.permute.xlu0 %196
    %198 = vrot.lane.b32.xlu0 %v84, 112
    %v199 = vpop.permute.xlu0 %198
    %vm200 = vcmp.lt.s32.totalorder %v90, 112
    %v201 = vsel %vm200, %v197, %v199
    %v202 = vsel %vm200, %v199, %v197
    %s203 = scalar_lea.vmem [#allocation3], 6
    %v204 = vld [vmem:[%s203] ss:$8 sm:$0x3]
    %v206 = vperm.slane %v204, 0
    %v207 = vperm.slane %v204, 1
    %v210 = vmul.f32 %v201, %v206
    %v211 = vmul.f32 %v202, %v207
    %212 = vst [vmem:[#allocation2 + $0x70] sm:$0xff] %v210
    %213 = vst [vmem:[#allocation2 + $0x78] sm:$0xff] %v211
    %214 = vrot.lane.b32.xlu0 %v83, 111
    %v215 = vpop.permute.xlu0 %214
    %216 = vrot.lane.b32.xlu0 %v84, 111
    %v217 = vpop.permute.xlu0 %216
    %vm218 = vcmp.lt.s32.totalorder %v90, 111
    %v219 = vsel %vm218, %v215, %v217
    %v220 = vsel %vm218, %v217, %v215
    %s221 = scalar_lea.vmem [#allocation3], 7
    %v222 = vld [vmem:[%s221] ss:$8 sm:$0x3]
    %v224 = vperm.slane %v222, 0
    %v225 = vperm.slane %v222, 1
    %v228 = vmul.f32 %v219, %v224
    %v229 = vmul.f32 %v220, %v225
    %230 = vst [vmem:[#allocation2 + $0x80] sm:$0xff] %v228
    %231 = vst [vmem:[#allocation2 + $0x88] sm:$0xff] %v229
    %v232 = vld [vmem:[#allocation8] sm:$0xff]
    %v233 = vld [vmem:[#allocation2] sm:$0xff]
    %v234 = vld [vmem:[#allocation2 + $0x8] sm:$0xff]
    %v235 = vld [vmem:[#allocation2 + $0x10] sm:$0xff]
    %v236 = vld [vmem:[#allocation2 + $0x18] sm:$0xff]
    %v237 = vld [vmem:[#allocation2 + $0x20] sm:$0xff]
    %v238 = vld [vmem:[#allocation2 + $0x28] sm:$0xff]
    %v239 = vld [vmem:[#allocation2 + $0x30] sm:$0xff]
    %v240 = vld [vmem:[#allocation2 + $0x38] sm:$0xff]
    %v241 = vld [vmem:[#allocation2 + $0x40] sm:$0xff]
    %v242 = vld [vmem:[#allocation2 + $0x48] sm:$0xff]
    %v243 = vld [vmem:[#allocation2 + $0x50] sm:$0xff]
    %v244 = vld [vmem:[#allocation2 + $0x58] sm:$0xff]
    %v245 = vld [vmem:[#allocation2 + $0x60] sm:$0xff]
    %v246 = vld [vmem:[#allocation2 + $0x68] sm:$0xff]
    %v247 = vld [vmem:[#allocation2 + $0x70] sm:$0xff]
    %v248 = vld [vmem:[#allocation2 + $0x78] sm:$0xff]
    %v249 = vld [vmem:[#allocation2 + $0x80] sm:$0xff]
    %v250 = vld [vmem:[#allocation2 + $0x88] sm:$0xff]
    %vm251 = vcmask 588800
    %v253 = vsel %vm251, %v232, 0
    %255 = vmatpush.msra.mxu0 0.0
    %256 = vmatpush.msra.mxu0 0.0
    %257 = vmatpush.msra.mxu0 0.0
    %258 = vmatpush.msra.mxu0 0.0
    %259 = vmatpush.msra.mxu0 0.0
    %260 = vmatpush.msra.mxu0 0.0
    %261 = vmatpush.msra.mxu0 0.0
    %262 = vmatpush.msra.mxu0 %v249
    %263 = vmatpush.msra.mxu0 %v247
    %264 = vmatpush.msra.mxu0 %v245
    %265 = vmatpush.msra.mxu0 %v243
    %266 = vmatpush.msra.mxu0 %v241
    %267 = vmatpush.msra.mxu0 %v239
    %268 = vmatpush.msra.mxu0 %v237
    %269 = vmatpush.msra.mxu0 %v235
    %270 = vmatpush.msra.mxu0 %v233
    %271 = vmatmul.f32.gmra.mxu0 %v253
    %v272 = vpop.f32.mrf.mxu0
    %v273 = vadd.f32 0.0, %v272
    %274 = vdwg.mxu0
    %275 = vmatpush.msra.mxu0 0.0
    %276 = vmatpush.msra.mxu0 0.0
    %277 = vmatpush.msra.mxu0 0.0
    %278 = vmatpush.msra.mxu0 0.0
    %279 = vmatpush.msra.mxu0 0.0
    %280 = vmatpush.msra.mxu0 0.0
    %281 = vmatpush.msra.mxu0 0.0
    %282 = vmatpush.msra.mxu0 %v250
    %283 = vmatpush.msra.mxu0 %v248
    %284 = vmatpush.msra.mxu0 %v246
    %285 = vmatpush.msra.mxu0 %v244
    %286 = vmatpush.msra.mxu0 %v242
    %287 = vmatpush.msra.mxu0 %v240
    %288 = vmatpush.msra.mxu0 %v238
    %289 = vmatpush.msra.mxu0 %v236
    %290 = vmatpush.msra.mxu0 %v234
    %291 = vmatmul.f32.gmra.mxu0 %v253
    %v292 = vpop.f32.mrf.mxu0
    %v293 = vadd.f32 0.0, %v292
    %294 = vdwg.mxu0
    %v295 = vadd.f32 %v273, %v293
    %296 = vadd.xlane.f32.xlu0 %v295
    %v297 = vpop.xlane.xlu0 %296
    %v298 = vmul.f32 %v297, 0.00390625
    %v299 = vsub.f32 %v273, %v298
    %v300 = vsub.f32 %v293, %v298
    %v301 = vmul.f32 %v299, %v299
    %v302 = vmul.f32 %v300, %v300
    %v303 = vadd.f32 %v301, %v302
    %304 = vadd.xlane.f32.xlu0 %v303
    %v305 = vpop.xlane.xlu0 %304
    %v306 = vmul.f32 %v305, 0.00390625
    %v307 = vadd.f32 %v306, 1e-05
    %v308 = vrsqrt.pop %v307
    %v309 = vmul.f32 %v308, %v307
    %v310 = vmul.f32 %v309, %v308
    %v311 = vmul.f32 0.5, %v310
    %v312 = vsub.f32 1.5, %v311
    %v313 = vmul.f32 %v308, %v312
    %vm314 = vweird.f32 %v307
    %vm315 = vweird.f32 %v308
    %vm316 = vmor %vm314, %vm315
    %v317 = vsel %vm316, %v308, %v313
    %v318 = vmul.f32 %v299, %v317
    %v319 = vmul.f32 %v300, %v317
    %v320 = vmax.f32 %v318, 0.0
    %v321 = vmax.f32 %v319, 0.0
    %322 = vrot.lane.b32.xlu0 %v320, 17
    %v323 = vpop.permute.xlu0 %322
    %324 = vrot.lane.b32.xlu0 %v321, 17
    %v325 = vpop.permute.xlu0 %324
    %v326 = vsel %vm91, %v323, %v325
    %v327 = vsel %vm91, %v325, %v323
    %v328 = vld [vmem:[#allocation3] ss:$8 sm:$0x3]
    %v330 = vperm.slane %v328, 0
    %v331 = vperm.slane %v328, 1
    %v334 = vmul.f32 %v327, %v330
    %v335 = vmul.f32 %v326, %v331
    %336 = vst [vmem:[#allocation2] sm:$0xff] %v334
    %337 = vst [vmem:[#allocation2 + $0x8] sm:$0xff] %v335
    %338 = vrot.lane.b32.xlu0 %v320, 16
    %v339 = vpop.permute.xlu0 %338
    %340 = vrot.lane.b32.xlu0 %v321, 16
    %v341 = vpop.permute.xlu0 %340
    %v342 = vsel %vm108, %v339, %v341
    %v343 = vsel %vm108, %v341, %v339
    %v344 = vld [vmem:[%s111] ss:$8 sm:$0x3]
    %v346 = vperm.slane %v344, 0
    %v347 = vperm.slane %v344, 1
    %v350 = vmul.f32 %v343, %v346
    %v351 = vmul.f32 %v342, %v347
    %352 = vst [vmem:[#allocation2 + $0x10] sm:$0xff] %v350
    %353 = vst [vmem:[#allocation2 + $0x18] sm:$0xff] %v351
    %354 = vrot.lane.b32.xlu0 %v320, 15
    %v355 = vpop.permute.xlu0 %354
    %356 = vrot.lane.b32.xlu0 %v321, 15
    %v357 = vpop.permute.xlu0 %356
    %v358 = vsel %vm126, %v355, %v357
    %v359 = vsel %vm126, %v357, %v355
    %v360 = vld [vmem:[%s129] ss:$8 sm:$0x3]
    %v362 = vperm.slane %v360, 0
    %v363 = vperm.slane %v360, 1
    %v366 = vmul.f32 %v359, %v362
    %v367 = vmul.f32 %v358, %v363
    %368 = vst [vmem:[#allocation2 + $0x20] sm:$0xff] %v366
    %369 = vst [vmem:[#allocation2 + $0x28] sm:$0xff] %v367
    %370 = vrot.lane.b32.xlu0 %v320, 1
    %v371 = vpop.permute.xlu0 %370
    %372 = vrot.lane.b32.xlu0 %v321, 1
    %v373 = vpop.permute.xlu0 %372
    %v374 = vsel %vm144, %v371, %v373
    %v375 = vsel %vm144, %v373, %v371
    %v376 = vld [vmem:[%s147] ss:$8 sm:$0x3]
    %v378 = vperm.slane %v376, 0
    %v379 = vperm.slane %v376, 1
    %v382 = vmul.f32 %v375, %v378
    %v383 = vmul.f32 %v374, %v379
    %384 = vst [vmem:[#allocation2 + $0x30] sm:$0xff] %v382
    %385 = vst [vmem:[#allocation2 + $0x38] sm:$0xff] %v383
    %386 = vst [vmem:[#allocation2 + $0x40] sm:$0xff] %v320
    %387 = vst [vmem:[#allocation2 + $0x48] sm:$0xff] %v321
    %388 = vrot.lane.b32.xlu0 %v320, 127
    %v389 = vpop.permute.xlu0 %388
    %390 = vrot.lane.b32.xlu0 %v321, 127
    %v391 = vpop.permute.xlu0 %390
    %v392 = vsel %vm164, %v389, %v391
    %v393 = vsel %vm164, %v391, %v389
    %v394 = vld [vmem:[%s167] ss:$8 sm:$0x3]
    %v396 = vperm.slane %v394, 0
    %v397 = vperm.slane %v394, 1
    %v400 = vmul.f32 %v392, %v396
    %v401 = vmul.f32 %v393, %v397
    %402 = vst [vmem:[#allocation2 + $0x50] sm:$0xff] %v400
    %403 = vst [vmem:[#allocation2 + $0x58] sm:$0xff] %v401
    %404 = vrot.lane.b32.xlu0 %v320, 113
    %v405 = vpop.permute.xlu0 %404
    %406 = vrot.lane.b32.xlu0 %v321, 113
    %v407 = vpop.permute.xlu0 %406
    %v408 = vsel %vm182, %v405, %v407
    %v409 = vsel %vm182, %v407, %v405
    %v410 = vld [vmem:[%s185] ss:$8 sm:$0x3]
    %v412 = vperm.slane %v410, 0
    %v413 = vperm.slane %v410, 1
    %v416 = vmul.f32 %v408, %v412
    %v417 = vmul.f32 %v409, %v413
    %418 = vst [vmem:[#allocation2 + $0x60] sm:$0xff] %v416
    %419 = vst [vmem:[#allocation2 + $0x68] sm:$0xff] %v417
    %420 = vrot.lane.b32.xlu0 %v320, 112
    %v421 = vpop.permute.xlu0 %420
    %422 = vrot.lane.b32.xlu0 %v321, 112
    %v423 = vpop.permute.xlu0 %422
    %v424 = vsel %vm200, %v421, %v423
    %v425 = vsel %vm200, %v423, %v421
    %v426 = vld [vmem:[%s203] ss:$8 sm:$0x3]
    %v428 = vperm.slane %v426, 0
    %v429 = vperm.slane %v426, 1
    %v432 = vmul.f32 %v424, %v428
    %v433 = vmul.f32 %v425, %v429
    %434 = vst [vmem:[#allocation2 + $0x70] sm:$0xff] %v432
    %435 = vst [vmem:[#allocation2 + $0x78] sm:$0xff] %v433
    %436 = vrot.lane.b32.xlu0 %v320, 111
    %v437 = vpop.permute.xlu0 %436
    %438 = vrot.lane.b32.xlu0 %v321, 111
    %v439 = vpop.permute.xlu0 %438
    %v440 = vsel %vm218, %v437, %v439
    %v441 = vsel %vm218, %v439, %v437
    %v442 = vld [vmem:[%s221] ss:$8 sm:$0x3]
    %v444 = vperm.slane %v442, 0
    %v445 = vperm.slane %v442, 1
    %v448 = vmul.f32 %v440, %v444
    %v449 = vmul.f32 %v441, %v445
    %450 = vst [vmem:[#allocation2 + $0x80] sm:$0xff] %v448
    %451 = vst [vmem:[#allocation2 + $0x88] sm:$0xff] %v449
    %v452 = vld [vmem:[#allocation9] sm:$0xff]
    %v453 = vld [vmem:[#allocation2] sm:$0xff]
    %v454 = vld [vmem:[#allocation2 + $0x8] sm:$0xff]
    %v455 = vld [vmem:[#allocation2 + $0x10] sm:$0xff]
    %v456 = vld [vmem:[#allocation2 + $0x18] sm:$0xff]
    %v457 = vld [vmem:[#allocation2 + $0x20] sm:$0xff]
    %v458 = vld [vmem:[#allocation2 + $0x28] sm:$0xff]
    %v459 = vld [vmem:[#allocation2 + $0x30] sm:$0xff]
    %v460 = vld [vmem:[#allocation2 + $0x38] sm:$0xff]
    %v461 = vld [vmem:[#allocation2 + $0x40] sm:$0xff]
    %v462 = vld [vmem:[#allocation2 + $0x48] sm:$0xff]
    %v463 = vld [vmem:[#allocation2 + $0x50] sm:$0xff]
    %v464 = vld [vmem:[#allocation2 + $0x58] sm:$0xff]
    %v465 = vld [vmem:[#allocation2 + $0x60] sm:$0xff]
    %v466 = vld [vmem:[#allocation2 + $0x68] sm:$0xff]
    %v467 = vld [vmem:[#allocation2 + $0x70] sm:$0xff]
    %v468 = vld [vmem:[#allocation2 + $0x78] sm:$0xff]
    %v469 = vld [vmem:[#allocation2 + $0x80] sm:$0xff]
    %v470 = vld [vmem:[#allocation2 + $0x88] sm:$0xff]
    %v472 = vsel %vm251, %v452, 0
    %474 = vmatpush.msra.mxu0 0.0
    %475 = vmatpush.msra.mxu0 0.0
    %476 = vmatpush.msra.mxu0 0.0
    %477 = vmatpush.msra.mxu0 0.0
    %478 = vmatpush.msra.mxu0 0.0
    %479 = vmatpush.msra.mxu0 0.0
    %480 = vmatpush.msra.mxu0 0.0
    %481 = vmatpush.msra.mxu0 %v469
    %482 = vmatpush.msra.mxu0 %v467
    %483 = vmatpush.msra.mxu0 %v465
    %484 = vmatpush.msra.mxu0 %v463
    %485 = vmatpush.msra.mxu0 %v461
    %486 = vmatpush.msra.mxu0 %v459
    %487 = vmatpush.msra.mxu0 %v457
    %488 = vmatpush.msra.mxu0 %v455
    %489 = vmatpush.msra.mxu0 %v453
    %490 = vmatmul.f32.gmra.mxu0 %v472
    %v491 = vpop.f32.mrf.mxu0
    %v492 = vadd.f32 0.0, %v491
    %493 = vdwg.mxu0
    %494 = vmatpush.msra.mxu0 0.0
    %495 = vmatpush.msra.mxu0 0.0
    %496 = vmatpush.msra.mxu0 0.0
    %497 = vmatpush.msra.mxu0 0.0
    %498 = vmatpush.msra.mxu0 0.0
    %499 = vmatpush.msra.mxu0 0.0
    %500 = vmatpush.msra.mxu0 0.0
    %501 = vmatpush.msra.mxu0 %v470
    %502 = vmatpush.msra.mxu0 %v468
    %503 = vmatpush.msra.mxu0 %v466
    %504 = vmatpush.msra.mxu0 %v464
    %505 = vmatpush.msra.mxu0 %v462
    %506 = vmatpush.msra.mxu0 %v460
    %507 = vmatpush.msra.mxu0 %v458
    %508 = vmatpush.msra.mxu0 %v456
    %509 = vmatpush.msra.mxu0 %v454
    %510 = vmatmul.f32.gmra.mxu0 %v472
    %v511 = vpop.f32.mrf.mxu0
    %v512 = vadd.f32 0.0, %v511
    %513 = vdwg.mxu0
    %v514 = vadd.f32 %v492, %v512
    %515 = vadd.xlane.f32.xlu0 %v514
    %v516 = vpop.xlane.xlu0 %515
    %v517 = vmul.f32 %v516, 0.00390625
    %v518 = vsub.f32 %v492, %v517
    %v519 = vsub.f32 %v512, %v517
    %v520 = vmul.f32 %v518, %v518
    %v521 = vmul.f32 %v519, %v519
    %v522 = vadd.f32 %v520, %v521
    %523 = vadd.xlane.f32.xlu0 %v522
    %v524 = vpop.xlane.xlu0 %523
    %v525 = vmul.f32 %v524, 0.00390625
    %v526 = vadd.f32 %v525, 1e-05
    %v527 = vrsqrt.pop %v526
    %v528 = vmul.f32 %v527, %v526
    %v529 = vmul.f32 %v528, %v527
    %v530 = vmul.f32 0.5, %v529
    %v531 = vsub.f32 1.5, %v530
    %v532 = vmul.f32 %v527, %v531
    %vm533 = vweird.f32 %v526
    %vm534 = vweird.f32 %v527
    %vm535 = vmor %vm533, %vm534
    %v536 = vsel %vm535, %v527, %v532
    %v537 = vmul.f32 %v518, %v536
    %v538 = vmul.f32 %v519, %v536
    %v539 = vld [vmem:[#allocation6] sm:$0xff]
    %541 = vst [vmem:[#allocation1] ss:$2 sm:$0xff] %v539
    %v542 = vld.sshfl [vmem:[#allocation1] sm:$0xff pattern:$0x75316420]
    %v543 = vld.sshfl [vmem:[#allocation1 + $0x8] sm:$0xff pattern:$0x75316420]
    %v546 = vadd.f32 %v537, %v542
    %v547 = vadd.f32 %v538, %v543
    %v550 = vrot.slane %v547, 4
    %v551 = vsel %vm82, %v546, %v550
    %553 = vst [vmem:[#allocation11] sm:$0xff] %v551
    %s554 = scalar_lea.vmem [#allocation6], 8
    %v555 = vld [vmem:[%s554] sm:$0xff]
    %557 = vst [vmem:[#allocation1] ss:$2 sm:$0xff] %v555
    %v558 = vld.sshfl [vmem:[#allocation1] sm:$0xff pattern:$0x75316420]
    %v559 = vld.sshfl [vmem:[#allocation1 + $0x8] sm:$0xff pattern:$0x75316420]
    %v562 = vsel %vm82, %v558, 0.0
    %v563 = vsel %vm82, %v559, 0.0
    %564 = vrot.lane.b32.xlu0 %v562, 17
    %v565 = vpop.permute.xlu0 %564
    %566 = vrot.lane.b32.xlu0 %v563, 17
    %v567 = vpop.permute.xlu0 %566
    %v568 = vsel %vm91, %v565, %v567
    %v569 = vsel %vm91, %v567, %v565
    %v570 = vld [vmem:[#allocation3] ss:$8 sm:$0x3]
    %v572 = vperm.slane %v570, 0
    %v573 = vperm.slane %v570, 1
    %v576 = vmul.f32 %v569, %v572
    %v577 = vmul.f32 %v568, %v573
    %578 = vst [vmem:[#allocation2] sm:$0xff] %v576
    %579 = vst [vmem:[#allocation2 + $0x8] sm:$0xff] %v577
    %580 = vrot.lane.b32.xlu0 %v562, 16
    %v581 = vpop.permute.xlu0 %580
    %582 = vrot.lane.b32.xlu0 %v563, 16
    %v583 = vpop.permute.xlu0 %582
    %v584 = vsel %vm108, %v581, %v583
    %v585 = vsel %vm108, %v583, %v581
    %v586 = vld [vmem:[%s111] ss:$8 sm:$0x3]
    %v588 = vperm.slane %v586, 0
    %v589 = vperm.slane %v586, 1
    %v592 = vmul.f32 %v585, %v588
    %v593 = vmul.f32 %v584, %v589
    %594 = vst [vmem:[#allocation2 + $0x10] sm:$0xff] %v592
    %595 = vst [vmem:[#allocation2 + $0x18] sm:$0xff] %v593
    %596 = vrot.lane.b32.xlu0 %v562, 15
    %v597 = vpop.permute.xlu0 %596
    %598 = vrot.lane.b32.xlu0 %v563, 15
    %v599 = vpop.permute.xlu0 %598
    %v600 = vsel %vm126, %v597, %v599
    %v601 = vsel %vm126, %v599, %v597
    %v602 = vld [vmem:[%s129] ss:$8 sm:$0x3]
    %v604 = vperm.slane %v602, 0
    %v605 = vperm.slane %v602, 1
    %v608 = vmul.f32 %v601, %v604
    %v609 = vmul.f32 %v600, %v605
    %610 = vst [vmem:[#allocation2 + $0x20] sm:$0xff] %v608
    %611 = vst [vmem:[#allocation2 + $0x28] sm:$0xff] %v609
    %612 = vrot.lane.b32.xlu0 %v562, 1
    %v613 = vpop.permute.xlu0 %612
    %614 = vrot.lane.b32.xlu0 %v563, 1
    %v615 = vpop.permute.xlu0 %614
    %v616 = vsel %vm144, %v613, %v615
    %v617 = vsel %vm144, %v615, %v613
    %v618 = vld [vmem:[%s147] ss:$8 sm:$0x3]
    %v620 = vperm.slane %v618, 0
    %v621 = vperm.slane %v618, 1
    %v624 = vmul.f32 %v617, %v620
    %v625 = vmul.f32 %v616, %v621
    %626 = vst [vmem:[#allocation2 + $0x30] sm:$0xff] %v624
    %627 = vst [vmem:[#allocation2 + $0x38] sm:$0xff] %v625
    %628 = vst [vmem:[#allocation2 + $0x40] sm:$0xff] %v562
    %629 = vst [vmem:[#allocation2 + $0x48] sm:$0xff] %v563
    %630 = vrot.lane.b32.xlu0 %v562, 127
    %v631 = vpop.permute.xlu0 %630
    %632 = vrot.lane.b32.xlu0 %v563, 127
    %v633 = vpop.permute.xlu0 %632
    %v634 = vsel %vm164, %v631, %v633
    %v635 = vsel %vm164, %v633, %v631
    %v636 = vld [vmem:[%s167] ss:$8 sm:$0x3]
    %v638 = vperm.slane %v636, 0
    %v639 = vperm.slane %v636, 1
    %v642 = vmul.f32 %v634, %v638
    %v643 = vmul.f32 %v635, %v639
    %644 = vst [vmem:[#allocation2 + $0x50] sm:$0xff] %v642
    %645 = vst [vmem:[#allocation2 + $0x58] sm:$0xff] %v643
    %646 = vrot.lane.b32.xlu0 %v562, 113
    %v647 = vpop.permute.xlu0 %646
    %648 = vrot.lane.b32.xlu0 %v563, 113
    %v649 = vpop.permute.xlu0 %648
    %v650 = vsel %vm182, %v647, %v649
    %v651 = vsel %vm182, %v649, %v647
    %v652 = vld [vmem:[%s185] ss:$8 sm:$0x3]
    %v654 = vperm.slane %v652, 0
    %v655 = vperm.slane %v652, 1
    %v658 = vmul.f32 %v650, %v654
    %v659 = vmul.f32 %v651, %v655
    %660 = vst [vmem:[#allocation2 + $0x60] sm:$0xff] %v658
    %661 = vst [vmem:[#allocation2 + $0x68] sm:$0xff] %v659
    %662 = vrot.lane.b32.xlu0 %v562, 112
    %v663 = vpop.permute.xlu0 %662
    %664 = vrot.lane.b32.xlu0 %v563, 112
    %v665 = vpop.permute.xlu0 %664
    %v666 = vsel %vm200, %v663, %v665
    %v667 = vsel %vm200, %v665, %v663
    %v668 = vld [vmem:[%s203] ss:$8 sm:$0x3]
    %v670 = vperm.slane %v668, 0
    %v671 = vperm.slane %v668, 1
    %v674 = vmul.f32 %v666, %v670
    %v675 = vmul.f32 %v667, %v671
    %676 = vst [vmem:[#allocation2 + $0x70] sm:$0xff] %v674
    %677 = vst [vmem:[#allocation2 + $0x78] sm:$0xff] %v675
    %678 = vrot.lane.b32.xlu0 %v562, 111
    %v679 = vpop.permute.xlu0 %678
    %680 = vrot.lane.b32.xlu0 %v563, 111
    %v681 = vpop.permute.xlu0 %680
    %v682 = vsel %vm218, %v679, %v681
    %v683 = vsel %vm218, %v681, %v679
    %v684 = vld [vmem:[%s221] ss:$8 sm:$0x3]
    %v686 = vperm.slane %v684, 0
    %v687 = vperm.slane %v684, 1
    %v690 = vmul.f32 %v682, %v686
    %v691 = vmul.f32 %v683, %v687
    %692 = vst [vmem:[#allocation2 + $0x80] sm:$0xff] %v690
    %693 = vst [vmem:[#allocation2 + $0x88] sm:$0xff] %v691
    %v694 = vld [vmem:[#allocation8] sm:$0xff]
    %v695 = vld [vmem:[#allocation2] sm:$0xff]
    %v696 = vld [vmem:[#allocation2 + $0x8] sm:$0xff]
    %v697 = vld [vmem:[#allocation2 + $0x10] sm:$0xff]
    %v698 = vld [vmem:[#allocation2 + $0x18] sm:$0xff]
    %v699 = vld [vmem:[#allocation2 + $0x20] sm:$0xff]
    %v700 = vld [vmem:[#allocation2 + $0x28] sm:$0xff]
    %v701 = vld [vmem:[#allocation2 + $0x30] sm:$0xff]
    %v702 = vld [vmem:[#allocation2 + $0x38] sm:$0xff]
    %v703 = vld [vmem:[#allocation2 + $0x40] sm:$0xff]
    %v704 = vld [vmem:[#allocation2 + $0x48] sm:$0xff]
    %v705 = vld [vmem:[#allocation2 + $0x50] sm:$0xff]
    %v706 = vld [vmem:[#allocation2 + $0x58] sm:$0xff]
    %v707 = vld [vmem:[#allocation2 + $0x60] sm:$0xff]
    %v708 = vld [vmem:[#allocation2 + $0x68] sm:$0xff]
    %v709 = vld [vmem:[#allocation2 + $0x70] sm:$0xff]
    %v710 = vld [vmem:[#allocation2 + $0x78] sm:$0xff]
    %v711 = vld [vmem:[#allocation2 + $0x80] sm:$0xff]
    %v712 = vld [vmem:[#allocation2 + $0x88] sm:$0xff]
    %v714 = vsel %vm251, %v694, 0
    %716 = vmatpush.msra.mxu0 0.0
    %717 = vmatpush.msra.mxu0 0.0
    %718 = vmatpush.msra.mxu0 0.0
    %719 = vmatpush.msra.mxu0 0.0
    %720 = vmatpush.msra.mxu0 0.0
    %721 = vmatpush.msra.mxu0 0.0
    %722 = vmatpush.msra.mxu0 0.0
    %723 = vmatpush.msra.mxu0 %v711
    %724 = vmatpush.msra.mxu0 %v709
    %725 = vmatpush.msra.mxu0 %v707
    %726 = vmatpush.msra.mxu0 %v705
    %727 = vmatpush.msra.mxu0 %v703
    %728 = vmatpush.msra.mxu0 %v701
    %729 = vmatpush.msra.mxu0 %v699
    %730 = vmatpush.msra.mxu0 %v697
    %731 = vmatpush.msra.mxu0 %v695
    %732 = vmatmul.f32.gmra.mxu0 %v714
    %v733 = vpop.f32.mrf.mxu0
    %v734 = vadd.f32 0.0, %v733
    %735 = vdwg.mxu0
    %736 = vmatpush.msra.mxu0 0.0
    %737 = vmatpush.msra.mxu0 0.0
    %738 = vmatpush.msra.mxu0 0.0
    %739 = vmatpush.msra.mxu0 0.0
    %740 = vmatpush.msra.mxu0 0.0
    %741 = vmatpush.msra.mxu0 0.0
    %742 = vmatpush.msra.mxu0 0.0
    %743 = vmatpush.msra.mxu0 %v712
    %744 = vmatpush.msra.mxu0 %v710
    %745 = vmatpush.msra.mxu0 %v708
    %746 = vmatpush.msra.mxu0 %v706
    %747 = vmatpush.msra.mxu0 %v704
    %748 = vmatpush.msra.mxu0 %v702
    %749 = vmatpush.msra.mxu0 %v700
    %750 = vmatpush.msra.mxu0 %v698
    %751 = vmatpush.msra.mxu0 %v696
    %752 = vmatmul.f32.gmra.mxu0 %v714
    %v753 = vpop.f32.mrf.mxu0
    %v754 = vadd.f32 0.0, %v753
    %755 = vdwg.mxu0
    %v756 = vadd.f32 %v734, %v754
    %757 = vadd.xlane.f32.xlu0 %v756
    %v758 = vpop.xlane.xlu0 %757
    %v759 = vmul.f32 %v758, 0.00390625
    %v760 = vsub.f32 %v734, %v759
    %v761 = vsub.f32 %v754, %v759
    %v762 = vmul.f32 %v760, %v760
    %v763 = vmul.f32 %v761, %v761
    %v764 = vadd.f32 %v762, %v763
    %765 = vadd.xlane.f32.xlu0 %v764
    %v766 = vpop.xlane.xlu0 %765
    %v767 = vmul.f32 %v766, 0.00390625
    %v768 = vadd.f32 %v767, 1e-05
    %v769 = vrsqrt.pop %v768
    %v770 = vmul.f32 %v769, %v768
    %v771 = vmul.f32 %v770, %v769
    %v772 = vmul.f32 0.5, %v771
    %v773 = vsub.f32 1.5, %v772
    %v774 = vmul.f32 %v769, %v773
    %vm775 = vweird.f32 %v768
    %vm776 = vweird.f32 %v769
    %vm777 = vmor %vm775, %vm776
    %v778 = vsel %vm777, %v769, %v774
    %v779 = vmul.f32 %v760, %v778
    %v780 = vmul.f32 %v761, %v778
    %v781 = vmax.f32 %v779, 0.0
    %v782 = vmax.f32 %v780, 0.0
    %783 = vrot.lane.b32.xlu0 %v781, 17
    %v784 = vpop.permute.xlu0 %783
    %785 = vrot.lane.b32.xlu0 %v782, 17
    %v786 = vpop.permute.xlu0 %785
    %v787 = vsel %vm91, %v784, %v786
    %v788 = vsel %vm91, %v786, %v784
    %v789 = vld [vmem:[#allocation3] ss:$8 sm:$0x3]
    %v791 = vperm.slane %v789, 0
    %v792 = vperm.slane %v789, 1
    %v795 = vmul.f32 %v788, %v791
    %v796 = vmul.f32 %v787, %v792
    %797 = vst [vmem:[#allocation2] sm:$0xff] %v795
    %798 = vst [vmem:[#allocation2 + $0x8] sm:$0xff] %v796
    %799 = vrot.lane.b32.xlu0 %v781, 16
    %v800 = vpop.permute.xlu0 %799
    %801 = vrot.lane.b32.xlu0 %v782, 16
    %v802 = vpop.permute.xlu0 %801
    %v803 = vsel %vm108, %v800, %v802
    %v804 = vsel %vm108, %v802, %v800
    %v805 = vld [vmem:[%s111] ss:$8 sm:$0x3]
    %v807 = vperm.slane %v805, 0
    %v808 = vperm.slane %v805, 1
    %v811 = vmul.f32 %v804, %v807
    %v812 = vmul.f32 %v803, %v808
    %813 = vst [vmem:[#allocation2 + $0x10] sm:$0xff] %v811
    %814 = vst [vmem:[#allocation2 + $0x18] sm:$0xff] %v812
    %815 = vrot.lane.b32.xlu0 %v781, 15
    %v816 = vpop.permute.xlu0 %815
    %817 = vrot.lane.b32.xlu0 %v782, 15
    %v818 = vpop.permute.xlu0 %817
    %v819 = vsel %vm126, %v816, %v818
    %v820 = vsel %vm126, %v818, %v816
    %v821 = vld [vmem:[%s129] ss:$8 sm:$0x3]
    %v823 = vperm.slane %v821, 0
    %v824 = vperm.slane %v821, 1
    %v827 = vmul.f32 %v820, %v823
    %v828 = vmul.f32 %v819, %v824
    %829 = vst [vmem:[#allocation2 + $0x20] sm:$0xff] %v827
    %830 = vst [vmem:[#allocation2 + $0x28] sm:$0xff] %v828
    %831 = vrot.lane.b32.xlu0 %v781, 1
    %v832 = vpop.permute.xlu0 %831
    %833 = vrot.lane.b32.xlu0 %v782, 1
    %v834 = vpop.permute.xlu0 %833
    %v835 = vsel %vm144, %v832, %v834
    %v836 = vsel %vm144, %v834, %v832
    %v837 = vld [vmem:[%s147] ss:$8 sm:$0x3]
    %v839 = vperm.slane %v837, 0
    %v840 = vperm.slane %v837, 1
    %v843 = vmul.f32 %v836, %v839
    %v844 = vmul.f32 %v835, %v840
    %845 = vst [vmem:[#allocation2 + $0x30] sm:$0xff] %v843
    %846 = vst [vmem:[#allocation2 + $0x38] sm:$0xff] %v844
    %847 = vst [vmem:[#allocation2 + $0x40] sm:$0xff] %v781
    %848 = vst [vmem:[#allocation2 + $0x48] sm:$0xff] %v782
    %849 = vrot.lane.b32.xlu0 %v781, 127
    %v850 = vpop.permute.xlu0 %849
    %851 = vrot.lane.b32.xlu0 %v782, 127
    %v852 = vpop.permute.xlu0 %851
    %v853 = vsel %vm164, %v850, %v852
    %v854 = vsel %vm164, %v852, %v850
    %v855 = vld [vmem:[%s167] ss:$8 sm:$0x3]
    %v857 = vperm.slane %v855, 0
    %v858 = vperm.slane %v855, 1
    %v861 = vmul.f32 %v853, %v857
    %v862 = vmul.f32 %v854, %v858
    %863 = vst [vmem:[#allocation2 + $0x50] sm:$0xff] %v861
    %864 = vst [vmem:[#allocation2 + $0x58] sm:$0xff] %v862
    %865 = vrot.lane.b32.xlu0 %v781, 113
    %v866 = vpop.permute.xlu0 %865
    %867 = vrot.lane.b32.xlu0 %v782, 113
    %v868 = vpop.permute.xlu0 %867
    %v869 = vsel %vm182, %v866, %v868
    %v870 = vsel %vm182, %v868, %v866
    %v871 = vld [vmem:[%s185] ss:$8 sm:$0x3]
    %v873 = vperm.slane %v871, 0
    %v874 = vperm.slane %v871, 1
    %v877 = vmul.f32 %v869, %v873
    %v878 = vmul.f32 %v870, %v874
    %879 = vst [vmem:[#allocation2 + $0x60] sm:$0xff] %v877
    %880 = vst [vmem:[#allocation2 + $0x68] sm:$0xff] %v878
    %881 = vrot.lane.b32.xlu0 %v781, 112
    %v882 = vpop.permute.xlu0 %881
    %883 = vrot.lane.b32.xlu0 %v782, 112
    %v884 = vpop.permute.xlu0 %883
    %v885 = vsel %vm200, %v882, %v884
    %v886 = vsel %vm200, %v884, %v882
    %v887 = vld [vmem:[%s203] ss:$8 sm:$0x3]
    %v889 = vperm.slane %v887, 0
    %v890 = vperm.slane %v887, 1
    %v893 = vmul.f32 %v885, %v889
    %v894 = vmul.f32 %v886, %v890
    %895 = vst [vmem:[#allocation2 + $0x70] sm:$0xff] %v893
    %896 = vst [vmem:[#allocation2 + $0x78] sm:$0xff] %v894
    %897 = vrot.lane.b32.xlu0 %v781, 111
    %v898 = vpop.permute.xlu0 %897
    %899 = vrot.lane.b32.xlu0 %v782, 111
    %v900 = vpop.permute.xlu0 %899
    %v901 = vsel %vm218, %v898, %v900
    %v902 = vsel %vm218, %v900, %v898
    %v903 = vld [vmem:[%s221] ss:$8 sm:$0x3]
    %v905 = vperm.slane %v903, 0
    %v906 = vperm.slane %v903, 1
    %v909 = vmul.f32 %v901, %v905
    %v910 = vmul.f32 %v902, %v906
    %911 = vst [vmem:[#allocation2 + $0x80] sm:$0xff] %v909
    %912 = vst [vmem:[#allocation2 + $0x88] sm:$0xff] %v910
    %v913 = vld [vmem:[#allocation9] sm:$0xff]
    %v914 = vld [vmem:[#allocation2] sm:$0xff]
    %v915 = vld [vmem:[#allocation2 + $0x8] sm:$0xff]
    %v916 = vld [vmem:[#allocation2 + $0x10] sm:$0xff]
    %v917 = vld [vmem:[#allocation2 + $0x18] sm:$0xff]
    %v918 = vld [vmem:[#allocation2 + $0x20] sm:$0xff]
    %v919 = vld [vmem:[#allocation2 + $0x28] sm:$0xff]
    %v920 = vld [vmem:[#allocation2 + $0x30] sm:$0xff]
    %v921 = vld [vmem:[#allocation2 + $0x38] sm:$0xff]
    %v922 = vld [vmem:[#allocation2 + $0x40] sm:$0xff]
    %v923 = vld [vmem:[#allocation2 + $0x48] sm:$0xff]
    %v924 = vld [vmem:[#allocation2 + $0x50] sm:$0xff]
    %v925 = vld [vmem:[#allocation2 + $0x58] sm:$0xff]
    %v926 = vld [vmem:[#allocation2 + $0x60] sm:$0xff]
    %v927 = vld [vmem:[#allocation2 + $0x68] sm:$0xff]
    %v928 = vld [vmem:[#allocation2 + $0x70] sm:$0xff]
    %v929 = vld [vmem:[#allocation2 + $0x78] sm:$0xff]
    %v930 = vld [vmem:[#allocation2 + $0x80] sm:$0xff]
    %v931 = vld [vmem:[#allocation2 + $0x88] sm:$0xff]
    %v933 = vsel %vm251, %v913, 0
    %935 = vmatpush.msra.mxu0 0.0
    %936 = vmatpush.msra.mxu0 0.0
    %937 = vmatpush.msra.mxu0 0.0
    %938 = vmatpush.msra.mxu0 0.0
    %939 = vmatpush.msra.mxu0 0.0
    %940 = vmatpush.msra.mxu0 0.0
    %941 = vmatpush.msra.mxu0 0.0
    %942 = vmatpush.msra.mxu0 %v930
    %943 = vmatpush.msra.mxu0 %v928
    %944 = vmatpush.msra.mxu0 %v926
    %945 = vmatpush.msra.mxu0 %v924
    %946 = vmatpush.msra.mxu0 %v922
    %947 = vmatpush.msra.mxu0 %v920
    %948 = vmatpush.msra.mxu0 %v918
    %949 = vmatpush.msra.mxu0 %v916
    %950 = vmatpush.msra.mxu0 %v914
    %951 = vmatmul.f32.gmra.mxu0 %v933
    %v952 = vpop.f32.mrf.mxu0
    %v953 = vadd.f32 0.0, %v952
    %954 = vdwg.mxu0
    %955 = vmatpush.msra.mxu0 0.0
    %956 = vmatpush.msra.mxu0 0.0
    %957 = vmatpush.msra.mxu0 0.0
    %958 = vmatpush.msra.mxu0 0.0
    %959 = vmatpush.msra.mxu0 0.0
    %960 = vmatpush.msra.mxu0 0.0
    %961 = vmatpush.msra.mxu0 0.0
    %962 = vmatpush.msra.mxu0 %v931
    %963 = vmatpush.msra.mxu0 %v929
    %964 = vmatpush.msra.mxu0 %v927
    %965 = vmatpush.msra.mxu0 %v925
    %966 = vmatpush.msra.mxu0 %v923
    %967 = vmatpush.msra.mxu0 %v921
    %968 = vmatpush.msra.mxu0 %v919
    %969 = vmatpush.msra.mxu0 %v917
    %970 = vmatpush.msra.mxu0 %v915
    %971 = vmatmul.f32.gmra.mxu0 %v933
    %v972 = vpop.f32.mrf.mxu0
    %v973 = vadd.f32 0.0, %v972
    %974 = vdwg.mxu0
    %v975 = vadd.f32 %v953, %v973
    %976 = vadd.xlane.f32.xlu0 %v975
    %v977 = vpop.xlane.xlu0 %976
    %v978 = vmul.f32 %v977, 0.00390625
    %v979 = vsub.f32 %v953, %v978
    %v980 = vsub.f32 %v973, %v978
    %v981 = vmul.f32 %v979, %v979
    %v982 = vmul.f32 %v980, %v980
    %v983 = vadd.f32 %v981, %v982
    %984 = vadd.xlane.f32.xlu0 %v983
    %v985 = vpop.xlane.xlu0 %984
    %v986 = vmul.f32 %v985, 0.00390625
    %v987 = vadd.f32 %v986, 1e-05
    %v988 = vrsqrt.pop %v987
    %v989 = vmul.f32 %v988, %v987
    %v990 = vmul.f32 %v989, %v988
    %v991 = vmul.f32 0.5, %v990
    %v992 = vsub.f32 1.5, %v991
    %v993 = vmul.f32 %v988, %v992
    %vm994 = vweird.f32 %v987
    %vm995 = vweird.f32 %v988
    %vm996 = vmor %vm994, %vm995
    %v997 = vsel %vm996, %v988, %v993
    %v998 = vmul.f32 %v979, %v997
    %v999 = vmul.f32 %v980, %v997
    %v1000 = vld [vmem:[%s554] sm:$0xff]
    %1002 = vst [vmem:[#allocation1] ss:$2 sm:$0xff] %v1000
    %v1003 = vld.sshfl [vmem:[#allocation1] sm:$0xff pattern:$0x75316420]
    %v1004 = vld.sshfl [vmem:[#allocation1 + $0x8] sm:$0xff pattern:$0x75316420]
    %v1007 = vadd.f32 %v998, %v1003
    %v1008 = vadd.f32 %v999, %v1004
    %v1011 = vrot.slane %v1008, 4
    %v1012 = vsel %vm82, %v1007, %v1011
    %s1014 = scalar_lea.vmem [#allocation11], 8
    %1015 = vst [vmem:[%s1014] sm:$0xff] %v1012
    // Predicated region
    $region34: #{tpu_custom_call.1} parent=1 // pred_check
      _
    $region35: #{tpu_custom_call.1} parent=1 // pred_check_branch
      %1017 = sbr.rel (0) target = $region37
    $region36: #{tpu_custom_call.1} parent=1 // pred_region
      %1019 = vsyncadd [#allocation5], 0
      %s1020 = sshll.u32 [#allocation11], 4
      %s1021 = int_to_ptr.vmem [resolvable:$true] %s1020
      %s1022 = sshll.u32 %s4, 4
      %s1023 = int_to_ptr.hbm [resolvable:$true] %s1022
      %1028 = dma.vmem_to_hbm [thread:$0]  %s1021, 256, %s1023, [#allocation5], 128, 128, 8
    $region37: #{tpu_custom_call.1} parent=1 // pred_fallthru
      _
    // Predicated region
    $region38: #{tpu_custom_call.1} parent=1 // pred_check
      _
    $region39: #{tpu_custom_call.1} parent=1 // pred_check_branch
      %1030 = sbr.rel (0) target = $region41
    $region40: #{tpu_custom_call.1} parent=1 // pred_region
      %1032 = dma.done [#allocation5], 256
    $region41: #{tpu_custom_call.1} parent=1 // pred_fallthru
      _
    %1033 = vsyncpa [#allocation4], 1
    %1034 = vsyncpa [#allocation7], 1
    %1035 = vsyncpa [#allocation10], 1
    %1036 = vsyncpa [#allocation5], 1

</llo_original>
